<compile_context>
chip_gen: v7x
topology: tpu7x:2x2x1
jax: 0.10.0
libtpu: 0.0.40
codegen_flags: <defaults>
</compile_context>

<pallas_src>
import functools

import jax
import jax.numpy as jnp
from jax import lax
from jax.experimental import pallas as pl
from jax.experimental.pallas import tpu as pltpu


# ---------------------------------------------------------------------------
# Pass 1: graph projection + (per-batch-element) graph convolution.
# ---------------------------------------------------------------------------
def gcu_project_kernel(x_ref, a_ref, b_ref, c_ref, wT_ref, ivT_ref, wtp_ref,
                       q_ref, zo_ref, xq_acc, n_acc):
    t = pl.program_id(1)

    @pl.when(t == 0)
    def _():
        xq_acc[...] = jnp.zeros_like(xq_acc)
        n_acc[...] = jnp.zeros_like(n_acc)

    # distT[v,p] = sum_i a[i,v] x[p,i]^2 - 2 sum_i (W[i,v]/var[i,v]^2) x[p,i]
    #              + sum_i W[i,v]^2/var[i,v]^2
    # Oriented (V, T): d-contraction dot_generals, no concat, no transpose.
    contract_d = (((1,), (1,)), ((), ()))
    xv = x_ref[...]                                              # (T, d)
    distT = (lax.dot_general(a_ref[...], xv * xv, contract_d,
                             preferred_element_type=jnp.float32)
             + lax.dot_general(b_ref[...], xv, contract_d,
                               preferred_element_type=jnp.float32)
             + c_ref[...])                                       # (V, T) f32

    # Soft assignment Q: softmax over vertices (sublane axis), lane-dense.
    distT = distT - jnp.min(distT, axis=0, keepdims=True)
    eT = jnp.exp(-0.5 * distT)
    qT = eT * pl.reciprocal(jnp.sum(eT, axis=0, keepdims=True), approx=True)
    q_ref[...] = qT.astype(q_ref.dtype)                          # (V, T)

    # Accumulate per-vertex pixel aggregates (f32 accumulation in scratch).
    xq_acc[...] += jnp.dot(qT.astype(x_ref.dtype), x_ref[...],
                           preferred_element_type=jnp.float32)   # (V, d)
    n_acc[...] += jnp.sum(qT, axis=1, keepdims=True)             # (V, 1)

    # Finalize once per batch element: vertex features + graph convolution.
    @pl.when(t == pl.num_programs(1) - 1)
    def _():
        n = n_acc[...]                                            # (V, 1)
        # z^T[v,i] = (sum_p Q[p,v] x[p,i] - W[i,v] n[v]) / var[i,v]
        zT = (xq_acc[...] - wT_ref[...] * n) * ivT_ref[...]       # (V, d)
        # optim-path stabilization; exact division (tiny op, accuracy matters)
        zT = (zT + 1e-7) / (n + 1e-7)
        nrm = jnp.sum(zT * zT, axis=1, keepdims=True)             # (V, 1)
        zcT = zT / (nrm + 1e-12)     # normalize each vertex by squared L2 norm
        zb = zcT.astype(wtp_ref.dtype)
        adj = lax.dot_general(zb, zb, contract_d,
                              preferred_element_type=jnp.float32)           # (V, V)
        vo = jnp.dot(zb, wtp_ref[...], preferred_element_type=jnp.float32)  # (V, Fp)
        vo = jnp.dot(adj.astype(zb.dtype), vo.astype(zb.dtype),
                     preferred_element_type=jnp.float32)
        zo_ref[...] = jnp.maximum(vo, 0.0).astype(zo_ref.dtype)


# ---------------------------------------------------------------------------
# Pass 2: reprojection  out[p, f] = sum_v Q^T[v, p] * Zo[v, f]
# ---------------------------------------------------------------------------
def gcu_reproject_kernel(q_ref, zo_ref, out_ref):
    out_ref[...] = lax.dot_general(
        q_ref[...], zo_ref[...], (((0,), (0,)), ((), ())),
        preferred_element_type=jnp.float32).astype(out_ref.dtype)


# ---------------------------------------------------------------------------
# Wrapper-side sizing helpers.
# ---------------------------------------------------------------------------
def _round_up(n, m):
    return ((n + m - 1) // m) * m


def _vmem_capacity_bytes():
    """Per-core VMEM capacity; conservative (v7x-sized) 64 MiB fallback."""
    try:
        cap = int(pltpu.get_tpu_info().vmem_capacity_bytes)
        if cap > 0:
            return cap
    except Exception:
        pass
    return 64 * 1024 * 1024


def _p1_vmem_bytes(t, d, v, fp, xb):
    v8 = max(v, 8)
    return (2 * t * d * xb            # x block, double buffered
            + 2 * t * d * xb          # x*x temporary + headroom
            + 8 * v8 * t * 4          # distT / exp / Q temporaries (f32)
            + 2 * v8 * t * xb         # Q output block, double buffered
            + v8 * (4 * d + 2 * fp) * 4 + d * fp * xb   # resident weights / zo
            + v8 * d * 4)             # xq accumulator


def _p2_vmem_bytes(t, v, fp, xb):
    v8 = max(v, 8)
    return 2 * v8 * t * xb + 2 * v8 * fp * xb + 3 * t * fp * 4


def _choose_pixel_tile(hw, d, v, fp, xb, budget, max_rows=2048):
    """Largest pixel tile (dividing HW, lane-friendly) fitting the VMEM budget."""
    cands = {hw} | {t for t in range(128, hw, 128) if hw % t == 0}
    smallest = min(cands)
    for t in sorted(cands, reverse=True):
        if t > max_rows and t != smallest:
            continue
        if (_p1_vmem_bytes(t, d, v, fp, xb) <= budget
                and _p2_vmem_bytes(t, v, fp, xb) <= budget):
            return t
    return smallest


# ---------------------------------------------------------------------------
# Forward pass.
# ---------------------------------------------------------------------------
@functools.partial(jax.jit, static_argnames=("h", "w", "V", "outfeatures",
                                             "pixel_tile", "vmem_limit",
                                             "precise"))
def _gcu_forward_impl(x, W, variance, weight, *, h, w, V, outfeatures,
                      pixel_tile, vmem_limit, precise):
    B = x.shape[0]
    d = W.shape[0]
    HW = h * w
    T = pixel_tile
    n_t = HW // T
    mm_dtype = jnp.float32 if precise else jnp.bfloat16
    Fp = _round_up(outfeatures, 128)          # lane-dense (unmasked) output stores

    # Weight-only precompute, hoisted out of the kernels (fused by XLA, f32).
    Wf = W.astype(jnp.float32)
    inv_v = 1.0 / variance.astype(jnp.float32)           # 1/var          (d, V)
    a = inv_v * inv_v                                    # 1/var^2
    wb = Wf * a                                          # W/var^2
    cT = jnp.sum(Wf * wb, axis=0)[:, None]               # (V, 1) f32
    aT = jnp.transpose(a).astype(mm_dtype)               # (V, d)
    m2wbT = jnp.transpose(-2.0 * wb).astype(mm_dtype)    # (V, d)
    wT = jnp.transpose(Wf)                               # (V, d) f32
    ivT = jnp.transpose(inv_v)                           # (V, d) f32
    wtp = weight.astype(mm_dtype)
    if Fp != outfeatures:
        wtp = jnp.pad(wtp, ((0, 0), (0, Fp - outfeatures)))

    x2 = jnp.reshape(x, (B * HW, d)).astype(mm_dtype)

    const = lambda b, t: (0, 0)

    # ---- pass 1: projection + graph conv -------------------------------------
    qT, zo = pl.pallas_call(
        gcu_project_kernel,
        out_shape=(jax.ShapeDtypeStruct((B, V, HW), mm_dtype),
                   jax.ShapeDtypeStruct((B, V, Fp), mm_dtype)),
        grid_spec=pltpu.PrefetchScalarGridSpec(
            num_scalar_prefetch=0,
            grid=(B, n_t),
            in_specs=[
                pl.BlockSpec((T, d), lambda b, t: (b * n_t + t, 0)),   # pixels
                pl.BlockSpec((V, d), const, pipeline_mode=pl.Buffered(1)),  # 1/var^2
                pl.BlockSpec((V, d), const, pipeline_mode=pl.Buffered(1)),  # -2W/var^2
                pl.BlockSpec((V, 1), const, pipeline_mode=pl.Buffered(1)),  # sum W^2/var^2
                pl.BlockSpec((V, d), const, pipeline_mode=pl.Buffered(1)),  # W^T
                pl.BlockSpec((V, d), const, pipeline_mode=pl.Buffered(1)),  # (1/var)^T
                pl.BlockSpec((d, Fp), const, pipeline_mode=pl.Buffered(1)), # projection
            ],
            out_specs=(
                pl.BlockSpec((None, V, T), lambda b, t: (b, 0, t)),    # Q^T (lane-dense)
                pl.BlockSpec((None, V, Fp), lambda b, t: (b, 0, 0)),   # vertex features
            ),
            scratch_shapes=[pltpu.VMEM((V, d), jnp.float32),
                            pltpu.VMEM((V, 1), jnp.float32)],
        ),
        compiler_params=pltpu.CompilerParams(
            dimension_semantics=("parallel", "arbitrary"),
            vmem_limit_bytes=vmem_limit,
        ),
    )(x2, aT, m2wbT, cT, wT, ivT, wtp)

    # ---- pass 2: reprojection out = Q @ Zo ------------------------------------
    out2 = pl.pallas_call(
        gcu_reproject_kernel,
        out_shape=jax.ShapeDtypeStruct((B * HW, Fp), jnp.float32),
        grid_spec=pltpu.PrefetchScalarGridSpec(
            num_scalar_prefetch=0,
            grid=(B, n_t),
            in_specs=[
                pl.BlockSpec((None, V, T), lambda b, t: (b, 0, t)),
                pl.BlockSpec((None, V, Fp), lambda b, t: (b, 0, 0)),
            ],
            out_specs=pl.BlockSpec((T, Fp), lambda b, t: (b * n_t + t, 0)),
        ),
        compiler_params=pltpu.CompilerParams(
            dimension_semantics=("parallel", "parallel"),
            vmem_limit_bytes=vmem_limit,
        ),
    )(qT, zo)

    out = out2[:, :outfeatures] if Fp != outfeatures else out2
    # GraphReproject: raw reshape (B, HW, F) -> (B, F, H, W), exactly as the module.
    return jnp.reshape(out, (B, outfeatures, h, w))


def gcu_forward(x, W, variance, weight, *, h, w, V, outfeatures,
                pixel_tile=None, precise=False):
    d = W.shape[0]
    HW = h * w
    assert HW % 8 == 0, "h*w must be a multiple of 8 for (8,128) tiling"
    Fp = _round_up(outfeatures, 128)
    xb = 4 if precise else 2

    cap = _vmem_capacity_bytes()
    if pixel_tile is None:
        pixel_tile = _choose_pixel_tile(HW, d, V, Fp, xb, budget=int(cap * 0.6))
    assert HW % pixel_tile == 0, (HW, pixel_tile)

    need = max(_p1_vmem_bytes(pixel_tile, d, V, Fp, xb),
               _p2_vmem_bytes(pixel_tile, V, Fp, xb))
    vmem_limit = int(min(cap * 0.9,
                         max(2 * need, 32 * 1024 * 1024, need + (8 << 20))))

    return _gcu_forward_impl(x, W, variance, weight, h=h, w=w, V=V,
                             outfeatures=outfeatures, pixel_tile=int(pixel_tile),
                             vmem_limit=vmem_limit, precise=bool(precise))


# ---------------------------------------------------------------------------
# Pure-JAX reference of the intended GCU forward math (f32), for validation.
# ---------------------------------------------------------------------------
def _gcu_reference(x, W, variance, weight, *, h, w, V, outfeatures):
    B = x.shape[0]
    d = W.shape[0]
    HW = h * w
    with jax.default_matmul_precision("float32"):
        Xf = jnp.reshape(x, (B, HW, d)).astype(jnp.float32)
        diff = Xf[:, :, :, None] - W[None, None, :, :]            # (B, HW, d, V)
        sdiff = diff / variance[None, None, :, :]
        dist = jnp.sum(sdiff ** 2, axis=2)                        # (B, HW, V)
        dist = dist - jnp.min(dist, axis=2, keepdims=True)
        Q = jnp.exp(-0.5 * dist)
        Q = Q / jnp.sum(Q, axis=2, keepdims=True)
        z = jnp.einsum('bpdv,bpv->bdv', sdiff, Q)                 # (B, d, V)
        n = jnp.sum(Q, axis=1)                                    # (B, V)
        z = (z + 1e-7) / (n[:, None, :] + 1e-7)
        nrm = jnp.sum(z ** 2, axis=1)                             # (B, V)
        Z = z / nrm[:, None, :]
        Adj = jnp.einsum('bdv,bdu->bvu', Z, Z)
        out = jnp.einsum('bdv,df->bvf', Z, weight)
        out = jnp.einsum('bvu,buf->bvf', Adj, out)
        Zo = jnp.maximum(out, 0.0)
        Xn = jnp.einsum('bpv,bvf->bpf', Q, Zo)                    # (B, HW, F)
    return jnp.reshape(Xn, (B, outfeatures, h, w))


def _xavier_uniform(key, shape):
    bound = (6.0 / (shape[0] + shape[1])) ** 0.5
    return jax.random.uniform(key, shape, jnp.float32, -bound, bound)


if __name__ == "__main__":
    # Small, module-consistent shapes: batch=2, h=w=8, d=128, V=8, outfeatures=64.
    B, H, Wsp, D, V, F = 2, 8, 8, 128, 8, 64

    key = jax.random.PRNGKey(0)
    kx, kw, kv, kwt = jax.random.split(key, 4)

    x = jax.random.normal(kx, (B, H, Wsp, D), dtype=jnp.float32)
    W_param = _xavier_uniform(kw, (D, V))
    # variance kept strictly positive for a well-conditioned synthetic init
    variance = jax.random.uniform(kv, (D, V), jnp.float32, 0.5, 1.5)
    weight = _xavier_uniform(kwt, (D, F))

    # Default (bf16-streaming) performance mode.
    out = gcu_forward(x, W_param, variance, weight,
                      h=H, w=Wsp, V=V, outfeatures=F)
    out = jax.block_until_ready(out)
    assert out.shape == (B, F, H, Wsp), out.shape
    assert bool(jnp.all(jnp.isfinite(out)))

    # Reference-accuracy (f32) mode checked against a pure-JAX reference.
    out_p = gcu_forward(x, W_param, variance, weight,
                        h=H, w=Wsp, V=V, outfeatures=F, precise=True)
    ref = _gcu_reference(x, W_param, variance, weight,
                         h=H, w=Wsp, V=V, outfeatures=F)
    out_p, ref = jax.block_until_ready((out_p, ref))
    rel_err = jnp.max(jnp.abs(out_p - ref)) / (jnp.max(jnp.abs(ref)) + 1e-12)
    assert bool(rel_err < 1e-2), float(rel_err)

    print("KERNEL_OK")
</pallas_src>

<mosaic_0001>
module attributes {stable_mosaic.version = 11 : i64} {
  func.func @gcu_reproject_kernel(%arg0: i32, %arg1: i32, %arg2: memref<1x8x64xbf16, #tpu.memory_space<vmem>>, %arg3: memref<1x8x128xbf16, #tpu.memory_space<vmem>>, %arg4: memref<64x128xf32, #tpu.memory_space<vmem>>) attributes {dimension_semantics = [#tpu.dimension_semantics<parallel>, #tpu.dimension_semantics<parallel>], iteration_bounds = array<i64: 2, 1>, scalar_prefetch = 0 : i64, scratch_operands = 0 : i64, tpu.core_type = #tpu.core_type<tc>, window_params = [{transform_indices = @transform_0, window_bounds = array<i64: 1, 8, 64>}, {transform_indices = @transform_1, window_bounds = array<i64: 1, 8, 128>}, {transform_indices = @transform_2, window_bounds = array<i64: 64, 128>}]} {
    %c0 = arith.constant 0 : index
    %c0_0 = arith.constant 0 : index
    %c0_1 = arith.constant 0 : index
    %0 = vector.load %arg2[%c0, %c0_0, %c0_1] : memref<1x8x64xbf16, #tpu.memory_space<vmem>>, vector<1x8x64xbf16>
    %1 = vector.shape_cast %0 : vector<1x8x64xbf16> to vector<8x64xbf16>
    %c0_2 = arith.constant 0 : index
    %c0_3 = arith.constant 0 : index
    %c0_4 = arith.constant 0 : index
    %2 = vector.load %arg3[%c0_2, %c0_3, %c0_4] : memref<1x8x128xbf16, #tpu.memory_space<vmem>>, vector<1x8x128xbf16>
    %3 = vector.shape_cast %2 : vector<1x8x128xbf16> to vector<8x128xbf16>
    %cst = arith.constant dense<0.000000e+00> : vector<64x128xf32>
    %4 = tpu.matmul %1, %3, %cst {dimension_numbers = #tpu.dot_dimension_numbers<[0], [0], [1], [1], [0, 1, 1, 1], [], []>} : vector<8x64xbf16>, vector<8x128xbf16>, vector<64x128xf32> -> vector<64x128xf32>
    %c0_5 = arith.constant 0 : index
    %c0_6 = arith.constant 0 : index
    %5 = vector.load %arg4[%c0_5, %c0_6] : memref<64x128xf32, #tpu.memory_space<vmem>>, vector<64x128xf32>
    tpu.vector_store %arg4[%c0_5, %c0_6], %4 {strides = array<i32>} : memref<64x128xf32, #tpu.memory_space<vmem>>, vector<64x128xf32>,
    return
  }
  func.func @transform_0(%arg0: i32, %arg1: i32) -> (i32, i32, i32) {
    %c0_i32 = arith.constant 0 : i32
    %c0_i32_0 = arith.constant 0 : i32
    return %arg0, %c0_i32, %arg1 : i32, i32, i32
  }
  func.func @transform_1(%arg0: i32, %arg1: i32) -> (i32, i32, i32) {
    %c0_i32 = arith.constant 0 : i32
    %c0_i32_0 = arith.constant 0 : i32
    %c0_i32_1 = arith.constant 0 : i32
    return %arg0, %c0_i32, %c0_i32_0 : i32, i32, i32
  }
  func.func @transform_2(%arg0: i32, %arg1: i32) -> (i32, i32) {
    %c1_i32 = arith.constant 1 : i32
    %0 = arith.muli %arg0, %c1_i32 : i32
    %1 = arith.addi %0, %arg1 : i32
    %c0_i32 = arith.constant 0 : i32
    %c0_i32_0 = arith.constant 0 : i32
    return %1, %c0_i32 : i32, i32
  }
}

module attributes {stable_mosaic.version = 11 : i64} {
  func.func @gcu_project_kernel(%arg0: i32, %arg1: i32, %arg2: memref<64x128xbf16, #tpu.memory_space<vmem>>, %arg3: memref<8x128xbf16, #tpu.memory_space<vmem>>, %arg4: memref<8x128xbf16, #tpu.memory_space<vmem>>, %arg5: memref<8x1xf32, #tpu.memory_space<vmem>>, %arg6: memref<8x128xf32, #tpu.memory_space<vmem>>, %arg7: memref<8x128xf32, #tpu.memory_space<vmem>>, %arg8: memref<128x128xbf16, #tpu.memory_space<vmem>>, %arg9: memref<1x8x64xbf16, #tpu.memory_space<vmem>>, %arg10: memref<1x8x128xbf16, #tpu.memory_space<vmem>>, %arg11: memref<8x128xf32, #tpu.memory_space<vmem>>, %arg12: memref<8x1xf32, #tpu.memory_space<vmem>>) attributes {dimension_semantics = [#tpu.dimension_semantics<parallel>, #tpu.dimension_semantics<arbitrary>], iteration_bounds = array<i64: 2, 1>, scalar_prefetch = 0 : i64, scratch_operands = 2 : i64, tpu.core_type = #tpu.core_type<tc>, window_params = [{transform_indices = @transform_0, window_bounds = array<i64: 64, 128>}, {pipeline_mode = #tpu.pipeline_mode<synchronous>, transform_indices = @transform_1, window_bounds = array<i64: 8, 128>}, {pipeline_mode = #tpu.pipeline_mode<synchronous>, transform_indices = @transform_2, window_bounds = array<i64: 8, 128>}, {pipeline_mode = #tpu.pipeline_mode<synchronous>, transform_indices = @transform_3, window_bounds = array<i64: 8, 1>}, {pipeline_mode = #tpu.pipeline_mode<synchronous>, transform_indices = @transform_4, window_bounds = array<i64: 8, 128>}, {pipeline_mode = #tpu.pipeline_mode<synchronous>, transform_indices = @transform_5, window_bounds = array<i64: 8, 128>}, {pipeline_mode = #tpu.pipeline_mode<synchronous>, transform_indices = @transform_6, window_bounds = array<i64: 128, 128>}, {transform_indices = @transform_7, window_bounds = array<i64: 1, 8, 64>}, {transform_indices = @transform_8, window_bounds = array<i64: 1, 8, 128>}]} {
    %c0_i32 = arith.constant 0 : i32
    %0 = arith.cmpi eq, %arg1, %c0_i32 : i32
    %1 = arith.extui %0 : i1 to i32
    %c0_i32_0 = arith.constant 0 : i32
    %2 = arith.cmpi ne, %1, %c0_i32_0 : i32
    scf.if %2 {
      %cst_29 = arith.constant 0.000000e+00 : f32
      %43 = vector.broadcast %cst_29 : f32 to vector<8x128xf32>
      %c0_30 = arith.constant 0 : index
      %c0_31 = arith.constant 0 : index
      %44 = vector.load %arg11[%c0_30, %c0_31] : memref<8x128xf32, #tpu.memory_space<vmem>>, vector<8x128xf32>
      tpu.vector_store %arg11[%c0_30, %c0_31], %43 {strides = array<i32>} : memref<8x128xf32, #tpu.memory_space<vmem>>, vector<8x128xf32>,
      %cst_32 = arith.constant 0.000000e+00 : f32
      %45 = vector.broadcast %cst_32 : f32 to vector<8x1xf32>
      %c0_33 = arith.constant 0 : index
      %c0_34 = arith.constant 0 : index
      %46 = vector.load %arg12[%c0_33, %c0_34] : memref<8x1xf32, #tpu.memory_space<vmem>>, vector<8x1xf32>
      tpu.vector_store %arg12[%c0_33, %c0_34], %45 {strides = array<i32>} : memref<8x1xf32, #tpu.memory_space<vmem>>, vector<8x1xf32>,
    } else {
    }
    %c0 = arith.constant 0 : index
    %c0_1 = arith.constant 0 : index
    %3 = vector.load %arg2[%c0, %c0_1] : memref<64x128xbf16, #tpu.memory_space<vmem>>, vector<64x128xbf16>
    %c0_2 = arith.constant 0 : index
    %c0_3 = arith.constant 0 : index
    %4 = vector.load %arg3[%c0_2, %c0_3] : memref<8x128xbf16, #tpu.memory_space<vmem>>, vector<8x128xbf16>
    %5 = arith.mulf %3, %3 : vector<64x128xbf16>
    %cst = arith.constant dense<0.000000e+00> : vector<8x64xf32>
    %6 = tpu.matmul %4, %5, %cst {dimension_numbers = #tpu.dot_dimension_numbers<[1], [1], [0], [0], [0, 0, 1, 0], [], []>} : vector<8x128xbf16>, vector<64x128xbf16>, vector<8x64xf32> -> vector<8x64xf32>
    %c0_4 = arith.constant 0 : index
    %c0_5 = arith.constant 0 : index
    %7 = vector.load %arg4[%c0_4, %c0_5] : memref<8x128xbf16, #tpu.memory_space<vmem>>, vector<8x128xbf16>
    %cst_6 = arith.constant dense<0.000000e+00> : vector<8x64xf32>
    %8 = tpu.matmul %7, %3, %cst_6 {dimension_numbers = #tpu.dot_dimension_numbers<[1], [1], [0], [0], [0, 0, 1, 0], [], []>} : vector<8x128xbf16>, vector<64x128xbf16>, vector<8x64xf32> -> vector<8x64xf32>
    %9 = arith.addf %6, %8 : vector<8x64xf32>
    %c0_7 = arith.constant 0 : index
    %c0_8 = arith.constant 0 : index
    %10 = vector.load %arg5[%c0_7, %c0_8] : memref<8x1xf32, #tpu.memory_space<vmem>>, vector<8x1xf32>
    %11 = vector.broadcast %10 : vector<8x1xf32> to vector<8x64xf32>
    %12 = arith.addf %9, %11 : vector<8x64xf32>
    %cst_9 = arith.constant dense<0x7F800000> : vector<64xf32>
    %13 = vector.multi_reduction <minimumf>, %12, %cst_9 [0] : vector<8x64xf32> to vector<64xf32>
    %14 = vector.shape_cast %13 : vector<64xf32> to vector<1x64xf32>
    %15 = vector.broadcast %14 : vector<1x64xf32> to vector<8x64xf32>
    %16 = arith.subf %12, %15 : vector<8x64xf32>
    %cst_10 = arith.constant -5.000000e-01 : f32
    %17 = vector.broadcast %cst_10 : f32 to vector<8x64xf32>
    %18 = arith.mulf %17, %16 : vector<8x64xf32>
    %19 = math.exp %18 : vector<8x64xf32>
    %cst_11 = arith.constant dense<0.000000e+00> : vector<64xf32>
    %20 = vector.multi_reduction <add>, %19, %cst_11 [0] : vector<8x64xf32> to vector<64xf32>
    %21 = vector.shape_cast %20 : vector<64xf32> to vector<1x64xf32>
    %22 = tpu.reciprocal %21 {approx = true} : vector<1x64xf32> -> vector<1x64xf32>
    %23 = vector.broadcast %22 : vector<1x64xf32> to vector<8x64xf32>
    %24 = arith.mulf %19, %23 : vector<8x64xf32>
    %25 = arith.truncf %24 : vector<8x64xf32> to vector<8x64xbf16>
    %c0_12 = arith.constant 0 : index
    %c0_13 = arith.constant 0 : index
    %c0_14 = arith.constant 0 : index
    %26 = vector.load %arg9[%c0_12, %c0_13, %c0_14] : memref<1x8x64xbf16, #tpu.memory_space<vmem>>, vector<1x8x64xbf16>
    %27 = vector.shape_cast %26 : vector<1x8x64xbf16> to vector<8x64xbf16>
    %28 = vector.shape_cast %25 : vector<8x64xbf16> to vector<1x8x64xbf16>
    tpu.vector_store %arg9[%c0_12, %c0_13, %c0_14], %28 {strides = array<i32>} : memref<1x8x64xbf16, #tpu.memory_space<vmem>>, vector<1x8x64xbf16>,
    %c0_15 = arith.constant 0 : index
    %c0_16 = arith.constant 0 : index
    %29 = vector.load %arg11[%c0_15, %c0_16] : memref<8x128xf32, #tpu.memory_space<vmem>>, vector<8x128xf32>
    %30 = arith.truncf %24 : vector<8x64xf32> to vector<8x64xbf16>
    %c0_17 = arith.constant 0 : index
    %c0_18 = arith.constant 0 : index
    %31 = vector.load %arg2[%c0_17, %c0_18] : memref<64x128xbf16, #tpu.memory_space<vmem>>, vector<64x128xbf16>
    %cst_19 = arith.constant dense<0.000000e+00> : vector<8x128xf32>
    %32 = tpu.matmul %30, %31, %cst_19 {dimension_numbers = #tpu.dot_dimension_numbers<[1], [0], [0], [1], [0, 0, 1, 1], [], []>} : vector<8x64xbf16>, vector<64x128xbf16>, vector<8x128xf32> -> vector<8x128xf32>
    %33 = arith.addf %29, %32 : vector<8x128xf32>
    %c0_20 = arith.constant 0 : index
    %c0_21 = arith.constant 0 : index
    %34 = vector.load %arg11[%c0_20, %c0_21] : memref<8x128xf32, #tpu.memory_space<vmem>>, vector<8x128xf32>
    tpu.vector_store %arg11[%c0_20, %c0_21], %33 {strides = array<i32>} : memref<8x128xf32, #tpu.memory_space<vmem>>, vector<8x128xf32>,
    %c0_22 = arith.constant 0 : index
    %c0_23 = arith.constant 0 : index
    %35 = vector.load %arg12[%c0_22, %c0_23] : memref<8x1xf32, #tpu.memory_space<vmem>>, vector<8x1xf32>
    %cst_24 = arith.constant dense<0.000000e+00> : vector<8xf32>
    %36 = vector.multi_reduction <add>, %24, %cst_24 [1] : vector<8x64xf32> to vector<8xf32>
    %37 = vector.shape_cast %36 : vector<8xf32> to vector<8x1xf32>
    %38 = arith.addf %35, %37 : vector<8x1xf32>
    %c0_25 = arith.constant 0 : index
    %c0_26 = arith.constant 0 : index
    %39 = vector.load %arg12[%c0_25, %c0_26] : memref<8x1xf32, #tpu.memory_space<vmem>>, vector<8x1xf32>
    tpu.vector_store %arg12[%c0_25, %c0_26], %38 {strides = array<i32>} : memref<8x1xf32, #tpu.memory_space<vmem>>, vector<8x1xf32>,
    %c0_i32_27 = arith.constant 0 : i32
    %40 = arith.cmpi eq, %arg1, %c0_i32_27 : i32
    %41 = arith.extui %40 : i1 to i32
    %c0_i32_28 = arith.constant 0 : i32
    %42 = arith.cmpi ne, %41, %c0_i32_28 : i32
    scf.if %42 {
      %c0_29 = arith.constant 0 : index
      %c0_30 = arith.constant 0 : index
      %43 = vector.load %arg12[%c0_29, %c0_30] : memref<8x1xf32, #tpu.memory_space<vmem>>, vector<8x1xf32>
      %c0_31 = arith.constant 0 : index
      %c0_32 = arith.constant 0 : index
      %44 = vector.load %arg11[%c0_31, %c0_32] : memref<8x128xf32, #tpu.memory_space<vmem>>, vector<8x128xf32>
      %c0_33 = arith.constant 0 : index
      %c0_34 = arith.constant 0 : index
      %45 = vector.load %arg6[%c0_33, %c0_34] : memref<8x128xf32, #tpu.memory_space<vmem>>, vector<8x128xf32>
      %46 = vector.broadcast %43 : vector<8x1xf32> to vector<8x128xf32>
      %47 = arith.mulf %45, %46 : vector<8x128xf32>
      %48 = arith.subf %44, %47 : vector<8x128xf32>
      %c0_35 = arith.constant 0 : index
      %c0_36 = arith.constant 0 : index
      %49 = vector.load %arg7[%c0_35, %c0_36] : memref<8x128xf32, #tpu.memory_space<vmem>>, vector<8x128xf32>
      %50 = arith.mulf %48, %49 : vector<8x128xf32>
      %cst_37 = arith.constant 1.000000e-07 : f32
      %51 = vector.broadcast %cst_37 : f32 to vector<8x128xf32>
      %52 = arith.addf %50, %51 : vector<8x128xf32>
      %cst_38 = arith.constant 1.000000e-07 : f32
      %53 = vector.broadcast %cst_38 : f32 to vector<8x1xf32>
      %54 = arith.addf %43, %53 : vector<8x1xf32>
      %55 = vector.broadcast %54 : vector<8x1xf32> to vector<8x128xf32>
      %56 = arith.divf %52, %55 : vector<8x128xf32>
      %57 = arith.mulf %56, %56 : vector<8x128xf32>
      %cst_39 = arith.constant dense<0.000000e+00> : vector<8xf32>
      %58 = vector.multi_reduction <add>, %57, %cst_39 [1] : vector<8x128xf32> to vector<8xf32>
      %59 = vector.shape_cast %58 : vector<8xf32> to vector<8x1xf32>
      %cst_40 = arith.constant 9.99999996E-13 : f32
      %60 = vector.broadcast %cst_40 : f32 to vector<8x1xf32>
      %61 = arith.addf %59, %60 : vector<8x1xf32>
      %62 = vector.broadcast %61 : vector<8x1xf32> to vector<8x128xf32>
      %63 = arith.divf %56, %62 : vector<8x128xf32>
      %64 = arith.truncf %63 : vector<8x128xf32> to vector<8x128xbf16>
      %cst_41 = arith.constant dense<0.000000e+00> : vector<8x8xf32>
      %65 = tpu.matmul %64, %64, %cst_41 {dimension_numbers = #tpu.dot_dimension_numbers<[1], [1], [0], [0], [0, 0, 1, 0], [], []>} : vector<8x128xbf16>, vector<8x128xbf16>, vector<8x8xf32> -> vector<8x8xf32>
      %c0_42 = arith.constant 0 : index
      %c0_43 = arith.constant 0 : index
      %66 = vector.load %arg8[%c0_42, %c0_43] : memref<128x128xbf16, #tpu.memory_space<vmem>>, vector<128x128xbf16>
      %cst_44 = arith.constant dense<0.000000e+00> : vector<8x128xf32>
      %67 = tpu.matmul %64, %66, %cst_44 {dimension_numbers = #tpu.dot_dimension_numbers<[1], [0], [0], [1], [0, 0, 1, 1], [], []>} : vector<8x128xbf16>, vector<128x128xbf16>, vector<8x128xf32> -> vector<8x128xf32>
      %68 = arith.truncf %65 : vector<8x8xf32> to vector<8x8xbf16>
      %69 = arith.truncf %67 : vector<8x128xf32> to vector<8x128xbf16>
      %cst_45 = arith.constant dense<0.000000e+00> : vector<8x128xf32>
      %70 = tpu.matmul %68, %69, %cst_45 {dimension_numbers = #tpu.dot_dimension_numbers<[1], [0], [0], [1], [0, 0, 1, 1], [], []>} : vector<8x8xbf16>, vector<8x128xbf16>, vector<8x128xf32> -> vector<8x128xf32>
      %cst_46 = arith.constant 0.000000e+00 : f32
      %71 = vector.broadcast %cst_46 : f32 to vector<8x128xf32>
      %72 = arith.maximumf %70, %71 : vector<8x128xf32>
      %73 = arith.truncf %72 : vector<8x128xf32> to vector<8x128xbf16>
      %c0_47 = arith.constant 0 : index
      %c0_48 = arith.constant 0 : index
      %c0_49 = arith.constant 0 : index
      %74 = vector.load %arg10[%c0_47, %c0_48, %c0_49] : memref<1x8x128xbf16, #tpu.memory_space<vmem>>, vector<1x8x128xbf16>
      %75 = vector.shape_cast %74 : vector<1x8x128xbf16> to vector<8x128xbf16>
      %76 = vector.shape_cast %73 : vector<8x128xbf16> to vector<1x8x128xbf16>
      tpu.vector_store %arg10[%c0_47, %c0_48, %c0_49], %76 {strides = array<i32>} : memref<1x8x128xbf16, #tpu.memory_space<vmem>>, vector<1x8x128xbf16>,
    } else {
    }
    return
  }
  func.func @transform_0(%arg0: i32, %arg1: i32) -> (i32, i32) {
    %c1_i32 = arith.constant 1 : i32
    %0 = arith.muli %arg0, %c1_i32 : i32
    %1 = arith.addi %0, %arg1 : i32
    %c0_i32 = arith.constant 0 : i32
    %c0_i32_0 = arith.constant 0 : i32
    return %1, %c0_i32 : i32, i32
  }
  func.func @transform_1(%arg0: i32, %arg1: i32) -> (i32, i32) {
    %c0_i32 = arith.constant 0 : i32
    %c0_i32_0 = arith.constant 0 : i32
    %c0_i32_1 = arith.constant 0 : i32
    return %c0_i32, %c0_i32_0 : i32, i32
  }
  func.func @transform_2(%arg0: i32, %arg1: i32) -> (i32, i32) {
    %c0_i32 = arith.constant 0 : i32
    %c0_i32_0 = arith.constant 0 : i32
    %c0_i32_1 = arith.constant 0 : i32
    return %c0_i32, %c0_i32_0 : i32, i32
  }
  func.func @transform_3(%arg0: i32, %arg1: i32) -> (i32, i32) {
    %c0_i32 = arith.constant 0 : i32
    %c0_i32_0 = arith.constant 0 : i32
    %c0_i32_1 = arith.constant 0 : i32
    return %c0_i32, %c0_i32_0 : i32, i32
  }
  func.func @transform_4(%arg0: i32, %arg1: i32) -> (i32, i32) {
    %c0_i32 = arith.constant 0 : i32
    %c0_i32_0 = arith.constant 0 : i32
    %c0_i32_1 = arith.constant 0 : i32
    return %c0_i32, %c0_i32_0 : i32, i32
  }
  func.func @transform_5(%arg0: i32, %arg1: i32) -> (i32, i32) {
    %c0_i32 = arith.constant 0 : i32
    %c0_i32_0 = arith.constant 0 : i32
    %c0_i32_1 = arith.constant 0 : i32
    return %c0_i32, %c0_i32_0 : i32, i32
  }
  func.func @transform_6(%arg0: i32, %arg1: i32) -> (i32, i32) {
    %c0_i32 = arith.constant 0 : i32
    %c0_i32_0 = arith.constant 0 : i32
    %c0_i32_1 = arith.constant 0 : i32
    return %c0_i32, %c0_i32_0 : i32, i32
  }
  func.func @transform_7(%arg0: i32, %arg1: i32) -> (i32, i32, i32) {
    %c0_i32 = arith.constant 0 : i32
    %c0_i32_0 = arith.constant 0 : i32
    return %arg0, %c0_i32, %arg1 : i32, i32, i32
  }
  func.func @transform_8(%arg0: i32, %arg1: i32) -> (i32, i32, i32) {
    %c0_i32 = arith.constant 0 : i32
    %c0_i32_0 = arith.constant 0 : i32
    %c0_i32_1 = arith.constant 0 : i32
    return %arg0, %c0_i32, %c0_i32_0 : i32, i32, i32
  }
}

</mosaic_0001>

<llo_original>
// kernel: _gcu_forward_impl.3
$region0: #{_gcu_forward_impl.3}
  #allocation0 [shape = 'u32[]', space=smem, size = 0x4, offset = 0x4, fixed_abs, tag = 'smem constant byte address 0x4 - core index']
  #allocation1 [shape = 'u32[144,128]{1,0:T(1,128)}', space=vmem, size = 0x12000, scoped, tag = 'internal scratch']
  %s0 = inlined_call_operand.vmem [shape: bf16[2,8,64], index: 0, kind: input, shape index: {}]
  %s1 = inlined_call_operand.vmem [shape: bf16[2,8,128], index: 1, kind: input, shape index: {}]
  %s2 = inlined_call_operand.vmem [shape: f32[128,128], index: 2, kind: output, shape index: {}]
  %s3 = sld [smem:[#allocation0]]
  $region41: #{_gcu_forward_impl.3} parent=0
    _
  %s5 = ssub.s32 1, %s3
  %s6 = scalar_select 0, %s5, %s3
  loop: start=0, step=1, limit=4
  $region2: #{_gcu_forward_impl.3} parent=0 // loop_pre_header
    _
  $region3: #{_gcu_forward_impl.3} parent=0 // loop_header
    %s8 = sphi 0, %s12
    %p9 = scmp.ge.s32.totalorder %s8, 4
    %s15 = sphi 0, %s27
    %s16 = sphi 0, %s23
    %s17 = sphi 0, %s15
    %s18 = sphi 0, %s16
    %s19 = sphi 0, %s17
    %s20 = sphi 0, %s18
    %s32 = sphi 0, %s34
    %s35 = sphi 0, %s32
    %s36 = sphi 0, %s35
    %s52 = sphi 0, %s36
    %s58 = sphi 0, %s60
    %s61 = sphi 0, %s58
    %s62 = sphi 0, %s61
    %s78 = sphi 0, %s62
    %s86 = sphi 0, %s88
    %s89 = sphi 0, %s86
    %s90 = sphi 0, %s89
    %s106 = sphi 0, %s90
  $region4: #{_gcu_forward_impl.3} parent=0 // loop_header_branch
    %11 = sbr.rel (%p9) target = $region8
  $region5: #{_gcu_forward_impl.3} parent=0 // loop_body
    %s13 = ssub.s32 %s8, 1
    %s14 = ssub.s32 %s8, 2
    %s21 = sadd.s32 1, %s16
    %p22 = scmp.ge.s32.totalorder %s21, 1
    %s23 = scalar_select %p22, 0, %s21
    %s24 = sadd.s32 1, %s15
    %s25 = scalar_select %p22, %s24, %s15
    %p26 = scmp.ge.s32.totalorder %s25, 2
    %s27 = scalar_select %p26, 0, %s25
    %s28 = ssub.s32 %s15, %s27
    %s29 = ssub.s32 %s16, %s23
    %s30 = sor.u32 %s28, %s29
    %p31 = scmp.eq.s32.totalorder %s30, 0
    %s33 = sadd.s32 %s32, 1
    %s34 = scalar_select %p31, %s32, %s33
    %p37 = pneg %p31
    %p38 = scmp.eq.s32.totalorder %s8, 1
    %p39 = por %p37, %p38
    %p40 = scmp.ne.s32.totalorder %s32, %s35
    %p41 = scmp.eq.s32.totalorder %s8, 0
    %p42 = por %p40, %p41
    %p43 = scmp.ne.s32.totalorder %s32, %s35
    %p44 = scmp.eq.s32.totalorder %s13, 1
    %p45 = por %p43, %p44
    %p46 = scmp.ne.s32.totalorder %s35, %s36
    %p47 = scmp.eq.s32.totalorder %s13, 0
    %p48 = por %p46, %p47
    %p49 = scmp.ne.s32.totalorder %s35, %s36
    %p50 = scmp.eq.s32.totalorder %s14, 1
    %p51 = por %p49, %p50
    %p53 = scmp.ne.s32.totalorder %s36, %s52
    %p54 = scmp.eq.s32.totalorder %s14, 0
    %p55 = por %p53, %p54
    %s56 = ssub.s32 %s15, %s27
    %p57 = scmp.eq.s32.totalorder %s56, 0
    %s59 = sadd.s32 %s58, 1
    %s60 = scalar_select %p57, %s58, %s59
    %p63 = pneg %p57
    %p64 = scmp.eq.s32.totalorder %s8, 1
    %p65 = por %p63, %p64
    %p66 = scmp.ne.s32.totalorder %s58, %s61
    %p67 = scmp.eq.s32.totalorder %s8, 0
    %p68 = por %p66, %p67
    %p69 = scmp.ne.s32.totalorder %s58, %s61
    %p70 = scmp.eq.s32.totalorder %s13, 1
    %p71 = por %p69, %p70
    %p72 = scmp.ne.s32.totalorder %s61, %s62
    %p73 = scmp.eq.s32.totalorder %s13, 0
    %p74 = por %p72, %p73
    %p75 = scmp.ne.s32.totalorder %s61, %s62
    %p76 = scmp.eq.s32.totalorder %s14, 1
    %p77 = por %p75, %p76
    %p79 = scmp.ne.s32.totalorder %s62, %s78
    %p80 = scmp.eq.s32.totalorder %s14, 0
    %p81 = por %p79, %p80
    %s82 = sadd.s32 %s15, %s16
    %s83 = sadd.s32 %s27, %s23
    %s84 = ssub.s32 %s82, %s83
    %p85 = scmp.eq.s32.totalorder %s84, 0
    %s87 = sadd.s32 %s86, 1
    %s88 = scalar_select %p85, %s86, %s87
    %p91 = pneg %p85
    %p92 = scmp.eq.s32.totalorder %s8, 1
    %p93 = por %p91, %p92
    %p94 = scmp.ne.s32.totalorder %s86, %s89
    %p95 = scmp.eq.s32.totalorder %s8, 0
    %p96 = por %p94, %p95
    %p97 = scmp.ne.s32.totalorder %s86, %s89
    %p98 = scmp.eq.s32.totalorder %s13, 1
    %p99 = por %p97, %p98
    %p100 = scmp.ne.s32.totalorder %s89, %s90
    %p101 = scmp.eq.s32.totalorder %s13, 0
    %p102 = por %p100, %p101
    %p103 = scmp.ne.s32.totalorder %s89, %s90
    %p104 = scmp.eq.s32.totalorder %s14, 1
    %p105 = por %p103, %p104
    %p107 = scmp.ne.s32.totalorder %s90, %s106
    %p108 = scmp.eq.s32.totalorder %s14, 0
    %p109 = por %p107, %p108
    %p110 = scmp.le.s32.totalorder 1, %s8
    %p111 = scmp.lt.s32.totalorder %s8, 3
    %p112 = pnand %p110, %p111
    %p113 = pneg %p112
    // Predicated region
    $region9: #{_gcu_forward_impl.3} parent=5 // pred_check
      _
    $region10: #{_gcu_forward_impl.3} parent=5 // pred_check_branch
      %115 = sbr.rel (%p112) target = $region12
    $region11: #{_gcu_forward_impl.3} parent=5 // pred_region
      %s116 = ssub.s32 %s8, 1
    $region12: #{_gcu_forward_impl.3} parent=5 // pred_fallthru
      _
    %p117 = scmp.lt.s32.totalorder %s8, 2
    // Predicated region
    $region13: #{_gcu_forward_impl.3} parent=5 // pred_check
      %p118 = pneg %p117
    $region14: #{_gcu_forward_impl.3} parent=5 // pred_check_branch
      %120 = sbr.rel (%p118) target = $region16
    $region15: #{_gcu_forward_impl.3} parent=5 // pred_region
      // Predicated region
      $region17: #{_gcu_forward_impl.3} parent=15 // pred_check
        %p121 = pneg %p42
      $region18: #{_gcu_forward_impl.3} parent=15 // pred_check_branch
        %123 = sbr.rel (%p121) target = $region20
      $region19: #{_gcu_forward_impl.3} parent=15 // pred_region
        %p124 = scmp.lt.s32.totalorder %s15, 1
        %s125 = scalar_select %p124, %s15, 1
        %p126 = scmp.lt.s32.totalorder %s16, 0
        %s127 = scalar_select %p126, %s16, 0
        %s128 = sadd.s32 %s127, %s125
        %s129 = smul.addr %s128, 4
        %s130 = scalar_lea.vmem %s0, %s129
      $region20: #{_gcu_forward_impl.3} parent=15 // pred_fallthru
        _
      // Predicated region
      $region21: #{_gcu_forward_impl.3} parent=15 // pred_check
        %p131 = pneg %p68
      $region22: #{_gcu_forward_impl.3} parent=15 // pred_check_branch
        %133 = sbr.rel (%p131) target = $region24
      $region23: #{_gcu_forward_impl.3} parent=15 // pred_region
        %p134 = scmp.lt.s32.totalorder %s15, 1
        %s135 = scalar_select %p134, %s15, 1
        %s136 = smul.addr %s135, 4
        %s137 = scalar_lea.vmem %s1, %s136
      $region24: #{_gcu_forward_impl.3} parent=15 // pred_fallthru
        _
    $region16: #{_gcu_forward_impl.3} parent=5 // pred_fallthru
      _
    %p138 = scmp.le.s32.totalorder 1, %s8
    %p139 = scmp.lt.s32.totalorder %s8, 3
    %p140 = pnand %p138, %p139
    %p141 = pneg %p140
    // Predicated region
    $region25: #{_gcu_forward_impl.3} parent=5 // pred_check
      _
    $region26: #{_gcu_forward_impl.3} parent=5 // pred_check_branch
      %143 = sbr.rel (%p140) target = $region28
    $region27: #{_gcu_forward_impl.3} parent=5 // pred_region
      %s144 = ssub.s32 %s8, 1
      %p145 = scmp.lt.s32.totalorder %s17, 1
      %s146 = scalar_select %p145, %s17, 1
      %p147 = scmp.lt.s32.totalorder %s18, 0
      %s148 = scalar_select %p147, %s18, 0
      %s149 = sadd.s32 %s148, %s146
      %s150 = smul.addr %s149, 4
      %s151 = scalar_lea.vmem %s0, %s150
      %p152 = pneg %p48
      %p153 = pneg %p45
      %p154 = scmp.lt.s32.totalorder %s17, 1
      %s155 = scalar_select %p154, %s17, 1
      %s156 = smul.addr %s155, 4
      %s157 = scalar_lea.vmem %s1, %s156
      %p158 = pneg %p74
      %p159 = pneg %p71
      %p160 = pneg %p102
      %p161 = pneg %p99
      %s162 = sadd.s32 %s17, %s18
      %s163 = smul.u32 8, %s162
      %p164 = scmp.lt.s32.totalorder %s163, 15
      %s165 = scalar_select %p164, %s163, 15
      %s166 = smul.addr %s165, 8
      %s167 = scalar_lea.vmem %s2, %s166
      %p168 = scmp.lt.s32.totalorder %s17, 1
      %s169 = scalar_select %p168, %s17, 1
      %p170 = scmp.lt.s32.totalorder %s18, 0
      %s171 = scalar_select %p170, %s18, 0
      %s172 = sadd.s32 %s171, %s169
      %s173 = smul.addr %s172, 4
      %s174 = scalar_lea.vmem %s0, %s173
      %p175 = scmp.lt.s32.totalorder %s17, 1
      %s176 = scalar_select %p175, %s17, 1
      %s177 = smul.addr %s176, 4
      %s178 = scalar_lea.vmem %s1, %s177
      %s179 = sadd.s32 %s17, %s18
      %s180 = smul.u32 8, %s179
      %p181 = scmp.lt.s32.totalorder %s180, 15
      %s182 = scalar_select %p181, %s180, 15
      %s183 = smul.addr %s182, 8
      %s184 = scalar_lea.vmem %s2, %s183
      %s185 = sadd.s32 %s17, %s18
      %s186 = smul.u32 8, %s185
      %v188 = vld [vmem:[%s174] sm:$0xf]
      %v189 = vld [vmem:[%s178] sm:$0xf]
      %190 = vxpose.xlu0.c.b16.start [1/8] %v188, 128
      %191 = vxpose.xlu0.c.b16.cont [2/8] 0, 128
      %192 = vxpose.xlu0.c.b16.cont [3/8] 0, 128
      %193 = vxpose.xlu0.c.b16.cont [4/8] 0, 128
      %194 = vxpose.xlu0.c.b16.cont [5/8] 0, 128
      %195 = vxpose.xlu0.c.b16.cont [6/8] 0, 128
      %196 = vxpose.xlu0.c.b16.cont [7/8] 0, 128
      %197 = vxpose.xlu0.c.b16.end [8/8] 0, 128
      %v198 = vpop.trf.xlu0
      %v199 = vpop.trf.xlu0
      %v200 = vpop.trf.xlu0
      %v201 = vpop.trf.xlu0
      %v202 = vpop.trf.xlu0
      %v203 = vpop.trf.xlu0
      %v204 = vpop.trf.xlu0
      %v205 = vpop.trf.xlu0
      %vm206 = vcmask 64512
      %v208 = vsel %vm206, %v198, 0
      %v211 = vsel %vm206, %v199, 0
      %v214 = vsel %vm206, %v200, 0
      %v217 = vsel %vm206, %v201, 0
      %vm219 = vcmask 1043456
      %v221 = vsel %vm219, %v189, 0
      %223 = vmatprep.subr.bf16.mxu0 0
      %224 = vmatpush1.bf16.msra.mxu0 %v221
      %225 = vmatprep.subr.bf16.mxu0 0
      %226 = vmatpush1.bf16.msra.mxu0 0
      %227 = vmatprep.subr.bf16.mxu0 0
      %228 = vmatpush1.bf16.msra.mxu0 0
      %229 = vmatprep.subr.bf16.mxu0 0
      %230 = vmatpush1.bf16.msra.mxu0 0
      %231 = vmatprep.subr.bf16.mxu0 0
      %232 = vmatpush1.bf16.msra.mxu0 0
      %233 = vmatprep.subr.bf16.mxu0 0
      %234 = vmatpush1.bf16.msra.mxu0 0
      %235 = vmatprep.subr.bf16.mxu0 0
      %236 = vmatpush1.bf16.msra.mxu0 0
      %237 = vmatprep.subr.bf16.mxu0 0
      %238 = vmatpush1.bf16.msra.mxu0 0
      %239 = vmatprep.subr.bf16.mxu0 0
      %240 = vmatpush1.bf16.msra.mxu0 0
      %241 = vmatprep.subr.bf16.mxu0 0
      %242 = vmatpush1.bf16.msra.mxu0 0
      %243 = vmatprep.subr.bf16.mxu0 0
      %244 = vmatpush1.bf16.msra.mxu0 0
      %245 = vmatprep.subr.bf16.mxu0 0
      %246 = vmatpush1.bf16.msra.mxu0 0
      %247 = vmatprep.subr.bf16.mxu0 0
      %248 = vmatpush1.bf16.msra.mxu0 0
      %249 = vmatprep.subr.bf16.mxu0 0
      %250 = vmatpush1.bf16.msra.mxu0 0
      %251 = vmatprep.subr.bf16.mxu0 0
      %252 = vmatpush1.bf16.msra.mxu0 0
      %253 = vmatprep.subr.bf16.mxu0 0
      %254 = vmatpush1.bf16.msra.mxu0 0
      %255 = vmatprep.mubr.bf16.mxu0 0
      %256 = vmatmul.mubr.bf16.gmra.mrb[0].mxu0 %v208
      %v257 = vpop.f32.mrb[0].mxu0
      %v258 = vadd.f32 0.0, %v257
      %v259 = vpop.f32.mrb[0].mxu0
      %v260 = vpop.f32.mrb[0].mxu0
      %v261 = vadd.f32 0.0, %v260
      %v262 = vpop.f32.mrb[0].mxu0
      %263 = vmatprep.mubr.bf16.mxu0 0
      %264 = vmatmul.mubr.bf16.gmra.mrb[0].mxu0 %v211
      %v265 = vpop.f32.mrb[0].mxu0
      %v266 = vadd.f32 0.0, %v265
      %v267 = vpop.f32.mrb[0].mxu0
      %v268 = vpop.f32.mrb[0].mxu0
      %v269 = vadd.f32 0.0, %v268
      %v270 = vpop.f32.mrb[0].mxu0
      %271 = vmatprep.mubr.bf16.mxu0 0
      %272 = vmatmul.mubr.bf16.gmra.mrb[0].mxu0 %v214
      %v273 = vpop.f32.mrb[0].mxu0
      %v274 = vadd.f32 0.0, %v273
      %v275 = vpop.f32.mrb[0].mxu0
      %v276 = vpop.f32.mrb[0].mxu0
      %v277 = vadd.f32 0.0, %v276
      %v278 = vpop.f32.mrb[0].mxu0
      %279 = vmatprep.mubr.bf16.mxu0 0
      %280 = vmatmul.mubr.bf16.gmra.mrb[0].mxu0 %v217
      %v281 = vpop.f32.mrb[0].mxu0
      %v282 = vadd.f32 0.0, %v281
      %v283 = vpop.f32.mrb[0].mxu0
      %v284 = vpop.f32.mrb[0].mxu0
      %v285 = vadd.f32 0.0, %v284
      %v286 = vpop.f32.mrb[0].mxu0
      %287 = vdwg.mxu0
      %288 = vst [vmem:[%s184] sm:$0xff] %v258
      %289 = vst [vmem:[%s184 + $0x8] sm:$0xff] %v261
      %290 = vst [vmem:[%s184 + $0x10] sm:$0xff] %v266
      %291 = vst [vmem:[%s184 + $0x18] sm:$0xff] %v269
      %292 = vst [vmem:[%s184 + $0x20] sm:$0xff] %v274
      %293 = vst [vmem:[%s184 + $0x28] sm:$0xff] %v277
      %294 = vst [vmem:[%s184 + $0x30] sm:$0xff] %v282
      %295 = vst [vmem:[%s184 + $0x38] sm:$0xff] %v285
      %s296 = sadd.s32 %s17, %s18
      %s297 = smul.u32 8, %s296
      %p298 = scmp.lt.s32.totalorder %s297, 15
      %s299 = scalar_select %p298, %s297, 15
      %s300 = smul.addr %s299, 8
      %s301 = scalar_lea.vmem %s2, %s300
      // Predicated region
      $region29: #{_gcu_forward_impl.3} parent=27 // pred_check
        %p302 = pneg %p99
      $region30: #{_gcu_forward_impl.3} parent=27 // pred_check_branch
        %304 = sbr.rel (%p302) target = $region32
      $region31: #{_gcu_forward_impl.3} parent=27 // pred_region
        %s305 = sadd.s32 %s17, %s18
        %s306 = smul.u32 8, %s305
      $region32: #{_gcu_forward_impl.3} parent=27 // pred_fallthru
        _
    $region28: #{_gcu_forward_impl.3} parent=5 // pred_fallthru
      _
    %p307 = scmp.le.s32.totalorder 2, %s8
    // Predicated region
    $region33: #{_gcu_forward_impl.3} parent=5 // pred_check
      %p308 = pneg %p307
    $region34: #{_gcu_forward_impl.3} parent=5 // pred_check_branch
      %310 = sbr.rel (%p308) target = $region36
    $region35: #{_gcu_forward_impl.3} parent=5 // pred_region
      %s311 = ssub.s32 %s8, 2
      // Predicated region
      $region37: #{_gcu_forward_impl.3} parent=35 // pred_check
        %p312 = pneg %p105
      $region38: #{_gcu_forward_impl.3} parent=35 // pred_check_branch
        %314 = sbr.rel (%p312) target = $region40
      $region39: #{_gcu_forward_impl.3} parent=35 // pred_region
        %s315 = sadd.s32 %s19, %s20
        %s316 = smul.u32 8, %s315
        %p317 = scmp.lt.s32.totalorder %s316, 15
        %s318 = scalar_select %p317, %s316, 15
        %s319 = smul.addr %s318, 8
        %s320 = scalar_lea.vmem %s2, %s319
      $region40: #{_gcu_forward_impl.3} parent=35 // pred_fallthru
        _
    $region36: #{_gcu_forward_impl.3} parent=5 // pred_fallthru
      _
  $region6: #{_gcu_forward_impl.3} parent=0 // loop_footer
    %s12 = sadd.s32 1, %s8
  $region7: #{_gcu_forward_impl.3} parent=0 // loop_footer_branch
    %7 = sbr.rel target = $region3
  $region8: #{_gcu_forward_impl.3} parent=0 // loop_exit
    _

// kernel: _gcu_forward_impl.2
$region0: #{_gcu_forward_impl.2}
  #allocation0 [shape = 'u32[]', space=smem, size = 0x4, offset = 0x4, fixed_abs, tag = 'smem constant byte address 0x4 - core index']
  #allocation1 [shape = 'u32[144,128]{1,0:T(1,128)}', space=vmem, size = 0x12000, scoped, tag = 'internal scratch']
  #allocation2 [shape = 'f32[8,128]{1,0:T(8,128)}', space=vmem, size = 0x1000, scoped, tag = 'scratch operand']
  #allocation3 [shape = 'f32[8,1]{1,0:T(8,128)}', space=vmem, size = 0x1000, scoped, tag = 'scratch operand']
  %s0 = inlined_call_operand.vmem [shape: bf16[128,128], index: 0, kind: input, shape index: {}]
  %s1 = inlined_call_operand.vmem [shape: bf16[8,128], index: 1, kind: input, shape index: {}]
  %s2 = inlined_call_operand.vmem [shape: bf16[8,128], index: 2, kind: input, shape index: {}]
  %s3 = inlined_call_operand.vmem [shape: f32[8,1], index: 3, kind: input, shape index: {}]
  %s4 = inlined_call_operand.vmem [shape: f32[8,128], index: 4, kind: input, shape index: {}]
  %s5 = inlined_call_operand.vmem [shape: f32[8,128], index: 5, kind: input, shape index: {}]
  %s6 = inlined_call_operand.vmem [shape: bf16[128,128], index: 6, kind: input, shape index: {}]
  %s7 = inlined_call_operand.vmem [shape: bf16[2,8,64], index: 7, kind: output, shape index: {0}]
  %s8 = inlined_call_operand.vmem [shape: bf16[2,8,128], index: 8, kind: output, shape index: {1}]
  %9 = xla_tuple %s7, %s8
  %s10 = sld [smem:[#allocation0]]
  $region77: #{_gcu_forward_impl.2} parent=0
    _
  %s12 = ssub.s32 1, %s10
  %s13 = scalar_select 0, %s12, %s10
  loop: start=0, step=1, limit=4
  $region2: #{_gcu_forward_impl.2} parent=0 // loop_pre_header
    _
  $region3: #{_gcu_forward_impl.2} parent=0 // loop_header
    %s15 = sphi 0, %s19
    %p16 = scmp.ge.s32.totalorder %s15, 4
    %s22 = sphi 0, %s34
    %s23 = sphi 0, %s30
    %s24 = sphi 0, %s22
    %s25 = sphi 0, %s23
    %s26 = sphi 0, %s24
    %s27 = sphi 0, %s25
    %s39 = sphi 0, %s41
    %s42 = sphi 0, %s39
    %s43 = sphi 0, %s42
    %s59 = sphi 0, %s43
    %s63 = sphi 0, %s63
    %s65 = sphi 0, %s63
    %s66 = sphi 0, %s65
    %s80 = sphi 0, %s66
    %s84 = sphi 0, %s84
    %s86 = sphi 0, %s84
    %s87 = sphi 0, %s86
    %s101 = sphi 0, %s87
    %s105 = sphi 0, %s105
    %s107 = sphi 0, %s105
    %s108 = sphi 0, %s107
    %s122 = sphi 0, %s108
    %s126 = sphi 0, %s126
    %s128 = sphi 0, %s126
    %s129 = sphi 0, %s128
    %s143 = sphi 0, %s129
    %s147 = sphi 0, %s147
    %s149 = sphi 0, %s147
    %s150 = sphi 0, %s149
    %s164 = sphi 0, %s150
    %s168 = sphi 0, %s168
    %s170 = sphi 0, %s168
    %s171 = sphi 0, %s170
    %s185 = sphi 0, %s171
    %s193 = sphi 0, %s195
    %s196 = sphi 0, %s193
    %s197 = sphi 0, %s196
    %s213 = sphi 0, %s197
    %s219 = sphi 0, %s221
    %s222 = sphi 0, %s219
    %s223 = sphi 0, %s222
    %s239 = sphi 0, %s223
  $region4: #{_gcu_forward_impl.2} parent=0 // loop_header_branch
    %18 = sbr.rel (%p16) target = $region8
  $region5: #{_gcu_forward_impl.2} parent=0 // loop_body
    %s20 = ssub.s32 %s15, 1
    %s21 = ssub.s32 %s15, 2
    %s28 = sadd.s32 1, %s23
    %p29 = scmp.ge.s32.totalorder %s28, 1
    %s30 = scalar_select %p29, 0, %s28
    %s31 = sadd.s32 1, %s22
    %s32 = scalar_select %p29, %s31, %s22
    %p33 = scmp.ge.s32.totalorder %s32, 2
    %s34 = scalar_select %p33, 0, %s32
    %s35 = sadd.s32 %s22, %s23
    %s36 = sadd.s32 %s34, %s30
    %s37 = ssub.s32 %s35, %s36
    %p38 = scmp.eq.s32.totalorder %s37, 0
    %s40 = sadd.s32 %s39, 1
    %s41 = scalar_select %p38, %s39, %s40
    %p44 = pneg %p38
    %p45 = scmp.eq.s32.totalorder %s15, 1
    %p46 = por %p44, %p45
    %p47 = scmp.ne.s32.totalorder %s39, %s42
    %p48 = scmp.eq.s32.totalorder %s15, 0
    %p49 = por %p47, %p48
    %p50 = scmp.ne.s32.totalorder %s39, %s42
    %p51 = scmp.eq.s32.totalorder %s20, 1
    %p52 = por %p50, %p51
    %p53 = scmp.ne.s32.totalorder %s42, %s43
    %p54 = scmp.eq.s32.totalorder %s20, 0
    %p55 = por %p53, %p54
    %p56 = scmp.ne.s32.totalorder %s42, %s43
    %p57 = scmp.eq.s32.totalorder %s21, 1
    %p58 = por %p56, %p57
    %p60 = scmp.ne.s32.totalorder %s43, %s59
    %p61 = scmp.eq.s32.totalorder %s21, 0
    %p62 = por %p60, %p61
    %s64 = sadd.s32 %s63, 1
    %p67 = scmp.eq.s32.totalorder %s15, 1
    %p68 = scmp.ne.s32.totalorder %s63, %s65
    %p69 = scmp.eq.s32.totalorder %s15, 0
    %p70 = por %p68, %p69
    %p71 = scmp.ne.s32.totalorder %s63, %s65
    %p72 = scmp.eq.s32.totalorder %s20, 1
    %p73 = por %p71, %p72
    %p74 = scmp.ne.s32.totalorder %s65, %s66
    %p75 = scmp.eq.s32.totalorder %s20, 0
    %p76 = por %p74, %p75
    %p77 = scmp.ne.s32.totalorder %s65, %s66
    %p78 = scmp.eq.s32.totalorder %s21, 1
    %p79 = por %p77, %p78
    %p81 = scmp.ne.s32.totalorder %s66, %s80
    %p82 = scmp.eq.s32.totalorder %s21, 0
    %p83 = por %p81, %p82
    %s85 = sadd.s32 %s84, 1
    %p88 = scmp.eq.s32.totalorder %s15, 1
    %p89 = scmp.ne.s32.totalorder %s84, %s86
    %p90 = scmp.eq.s32.totalorder %s15, 0
    %p91 = por %p89, %p90
    %p92 = scmp.ne.s32.totalorder %s84, %s86
    %p93 = scmp.eq.s32.totalorder %s20, 1
    %p94 = por %p92, %p93
    %p95 = scmp.ne.s32.totalorder %s86, %s87
    %p96 = scmp.eq.s32.totalorder %s20, 0
    %p97 = por %p95, %p96
    %p98 = scmp.ne.s32.totalorder %s86, %s87
    %p99 = scmp.eq.s32.totalorder %s21, 1
    %p100 = por %p98, %p99
    %p102 = scmp.ne.s32.totalorder %s87, %s101
    %p103 = scmp.eq.s32.totalorder %s21, 0
    %p104 = por %p102, %p103
    %s106 = sadd.s32 %s105, 1
    %p109 = scmp.eq.s32.totalorder %s15, 1
    %p110 = scmp.ne.s32.totalorder %s105, %s107
    %p111 = scmp.eq.s32.totalorder %s15, 0
    %p112 = por %p110, %p111
    %p113 = scmp.ne.s32.totalorder %s105, %s107
    %p114 = scmp.eq.s32.totalorder %s20, 1
    %p115 = por %p113, %p114
    %p116 = scmp.ne.s32.totalorder %s107, %s108
    %p117 = scmp.eq.s32.totalorder %s20, 0
    %p118 = por %p116, %p117
    %p119 = scmp.ne.s32.totalorder %s107, %s108
    %p120 = scmp.eq.s32.totalorder %s21, 1
    %p121 = por %p119, %p120
    %p123 = scmp.ne.s32.totalorder %s108, %s122
    %p124 = scmp.eq.s32.totalorder %s21, 0
    %p125 = por %p123, %p124
    %s127 = sadd.s32 %s126, 1
    %p130 = scmp.eq.s32.totalorder %s15, 1
    %p131 = scmp.ne.s32.totalorder %s126, %s128
    %p132 = scmp.eq.s32.totalorder %s15, 0
    %p133 = por %p131, %p132
    %p134 = scmp.ne.s32.totalorder %s126, %s128
    %p135 = scmp.eq.s32.totalorder %s20, 1
    %p136 = por %p134, %p135
    %p137 = scmp.ne.s32.totalorder %s128, %s129
    %p138 = scmp.eq.s32.totalorder %s20, 0
    %p139 = por %p137, %p138
    %p140 = scmp.ne.s32.totalorder %s128, %s129
    %p141 = scmp.eq.s32.totalorder %s21, 1
    %p142 = por %p140, %p141
    %p144 = scmp.ne.s32.totalorder %s129, %s143
    %p145 = scmp.eq.s32.totalorder %s21, 0
    %p146 = por %p144, %p145
    %s148 = sadd.s32 %s147, 1
    %p151 = scmp.eq.s32.totalorder %s15, 1
    %p152 = scmp.ne.s32.totalorder %s147, %s149
    %p153 = scmp.eq.s32.totalorder %s15, 0
    %p154 = por %p152, %p153
    %p155 = scmp.ne.s32.totalorder %s147, %s149
    %p156 = scmp.eq.s32.totalorder %s20, 1
    %p157 = por %p155, %p156
    %p158 = scmp.ne.s32.totalorder %s149, %s150
    %p159 = scmp.eq.s32.totalorder %s20, 0
    %p160 = por %p158, %p159
    %p161 = scmp.ne.s32.totalorder %s149, %s150
    %p162 = scmp.eq.s32.totalorder %s21, 1
    %p163 = por %p161, %p162
    %p165 = scmp.ne.s32.totalorder %s150, %s164
    %p166 = scmp.eq.s32.totalorder %s21, 0
    %p167 = por %p165, %p166
    %s169 = sadd.s32 %s168, 1
    %p172 = scmp.eq.s32.totalorder %s15, 1
    %p173 = scmp.ne.s32.totalorder %s168, %s170
    %p174 = scmp.eq.s32.totalorder %s15, 0
    %p175 = por %p173, %p174
    %p176 = scmp.ne.s32.totalorder %s168, %s170
    %p177 = scmp.eq.s32.totalorder %s20, 1
    %p178 = por %p176, %p177
    %p179 = scmp.ne.s32.totalorder %s170, %s171
    %p180 = scmp.eq.s32.totalorder %s20, 0
    %p181 = por %p179, %p180
    %p182 = scmp.ne.s32.totalorder %s170, %s171
    %p183 = scmp.eq.s32.totalorder %s21, 1
    %p184 = por %p182, %p183
    %p186 = scmp.ne.s32.totalorder %s171, %s185
    %p187 = scmp.eq.s32.totalorder %s21, 0
    %p188 = por %p186, %p187
    %s189 = ssub.s32 %s22, %s34
    %s190 = ssub.s32 %s23, %s30
    %s191 = sor.u32 %s189, %s190
    %p192 = scmp.eq.s32.totalorder %s191, 0
    %s194 = sadd.s32 %s193, 1
    %s195 = scalar_select %p192, %s193, %s194
    %p198 = pneg %p192
    %p199 = scmp.eq.s32.totalorder %s15, 1
    %p200 = por %p198, %p199
    %p201 = scmp.ne.s32.totalorder %s193, %s196
    %p202 = scmp.eq.s32.totalorder %s15, 0
    %p203 = por %p201, %p202
    %p204 = scmp.ne.s32.totalorder %s193, %s196
    %p205 = scmp.eq.s32.totalorder %s20, 1
    %p206 = por %p204, %p205
    %p207 = scmp.ne.s32.totalorder %s196, %s197
    %p208 = scmp.eq.s32.totalorder %s20, 0
    %p209 = por %p207, %p208
    %p210 = scmp.ne.s32.totalorder %s196, %s197
    %p211 = scmp.eq.s32.totalorder %s21, 1
    %p212 = por %p210, %p211
    %p214 = scmp.ne.s32.totalorder %s197, %s213
    %p215 = scmp.eq.s32.totalorder %s21, 0
    %p216 = por %p214, %p215
    %s217 = ssub.s32 %s22, %s34
    %p218 = scmp.eq.s32.totalorder %s217, 0
    %s220 = sadd.s32 %s219, 1
    %s221 = scalar_select %p218, %s219, %s220
    %p224 = pneg %p218
    %p225 = scmp.eq.s32.totalorder %s15, 1
    %p226 = por %p224, %p225
    %p227 = scmp.ne.s32.totalorder %s219, %s222
    %p228 = scmp.eq.s32.totalorder %s15, 0
    %p229 = por %p227, %p228
    %p230 = scmp.ne.s32.totalorder %s219, %s222
    %p231 = scmp.eq.s32.totalorder %s20, 1
    %p232 = por %p230, %p231
    %p233 = scmp.ne.s32.totalorder %s222, %s223
    %p234 = scmp.eq.s32.totalorder %s20, 0
    %p235 = por %p233, %p234
    %p236 = scmp.ne.s32.totalorder %s222, %s223
    %p237 = scmp.eq.s32.totalorder %s21, 1
    %p238 = por %p236, %p237
    %p240 = scmp.ne.s32.totalorder %s223, %s239
    %p241 = scmp.eq.s32.totalorder %s21, 0
    %p242 = por %p240, %p241
    %p243 = scmp.le.s32.totalorder 1, %s15
    %p244 = scmp.lt.s32.totalorder %s15, 3
    %p245 = pnand %p243, %p244
    %p246 = pneg %p245
    // Predicated region
    $region9: #{_gcu_forward_impl.2} parent=5 // pred_check
      _
    $region10: #{_gcu_forward_impl.2} parent=5 // pred_check_branch
      %248 = sbr.rel (%p245) target = $region12
    $region11: #{_gcu_forward_impl.2} parent=5 // pred_region
      %s249 = ssub.s32 %s15, 1
      // Predicated region
      $region13: #{_gcu_forward_impl.2} parent=11 // pred_check
        %p250 = pneg %p76
      $region14: #{_gcu_forward_impl.2} parent=11 // pred_check_branch
        %252 = sbr.rel (%p250) target = $region16
      $region15: #{_gcu_forward_impl.2} parent=11 // pred_region
        _
      $region16: #{_gcu_forward_impl.2} parent=11 // pred_fallthru
        _
      // Predicated region
      $region17: #{_gcu_forward_impl.2} parent=11 // pred_check
        %p253 = pneg %p97
      $region18: #{_gcu_forward_impl.2} parent=11 // pred_check_branch
        %255 = sbr.rel (%p253) target = $region20
      $region19: #{_gcu_forward_impl.2} parent=11 // pred_region
        _
      $region20: #{_gcu_forward_impl.2} parent=11 // pred_fallthru
        _
      // Predicated region
      $region21: #{_gcu_forward_impl.2} parent=11 // pred_check
        %p256 = pneg %p118
      $region22: #{_gcu_forward_impl.2} parent=11 // pred_check_branch
        %258 = sbr.rel (%p256) target = $region24
      $region23: #{_gcu_forward_impl.2} parent=11 // pred_region
        _
      $region24: #{_gcu_forward_impl.2} parent=11 // pred_fallthru
        _
      // Predicated region
      $region25: #{_gcu_forward_impl.2} parent=11 // pred_check
        %p259 = pneg %p139
      $region26: #{_gcu_forward_impl.2} parent=11 // pred_check_branch
        %261 = sbr.rel (%p259) target = $region28
      $region27: #{_gcu_forward_impl.2} parent=11 // pred_region
        _
      $region28: #{_gcu_forward_impl.2} parent=11 // pred_fallthru
        _
      // Predicated region
      $region29: #{_gcu_forward_impl.2} parent=11 // pred_check
        %p262 = pneg %p160
      $region30: #{_gcu_forward_impl.2} parent=11 // pred_check_branch
        %264 = sbr.rel (%p262) target = $region32
      $region31: #{_gcu_forward_impl.2} parent=11 // pred_region
        _
      $region32: #{_gcu_forward_impl.2} parent=11 // pred_fallthru
        _
      // Predicated region
      $region33: #{_gcu_forward_impl.2} parent=11 // pred_check
        %p265 = pneg %p181
      $region34: #{_gcu_forward_impl.2} parent=11 // pred_check_branch
        %267 = sbr.rel (%p265) target = $region36
      $region35: #{_gcu_forward_impl.2} parent=11 // pred_region
        _
      $region36: #{_gcu_forward_impl.2} parent=11 // pred_fallthru
        _
    $region12: #{_gcu_forward_impl.2} parent=5 // pred_fallthru
      _
    %p268 = scmp.lt.s32.totalorder %s15, 2
    // Predicated region
    $region37: #{_gcu_forward_impl.2} parent=5 // pred_check
      %p269 = pneg %p268
    $region38: #{_gcu_forward_impl.2} parent=5 // pred_check_branch
      %271 = sbr.rel (%p269) target = $region40
    $region39: #{_gcu_forward_impl.2} parent=5 // pred_region
      // Predicated region
      $region41: #{_gcu_forward_impl.2} parent=39 // pred_check
        %p272 = pneg %p49
      $region42: #{_gcu_forward_impl.2} parent=39 // pred_check_branch
        %274 = sbr.rel (%p272) target = $region44
      $region43: #{_gcu_forward_impl.2} parent=39 // pred_region
        %s275 = sadd.s32 %s22, %s23
        %s276 = smul.u32 8, %s275
        %p277 = scmp.lt.s32.totalorder %s276, 15
        %s278 = scalar_select %p277, %s276, 15
        %s279 = smul.addr %s278, 4
        %s280 = scalar_lea.vmem %s0, %s279
        %s281 = sadd.s32 %s22, %s23
        %s282 = smul.u32 8, %s281
      $region44: #{_gcu_forward_impl.2} parent=39 // pred_fallthru
        _
    $region40: #{_gcu_forward_impl.2} parent=5 // pred_fallthru
      _
    %p283 = scmp.le.s32.totalorder 1, %s15
    %p284 = scmp.lt.s32.totalorder %s15, 3
    %p285 = pnand %p283, %p284
    %p286 = pneg %p285
    // Predicated region
    $region45: #{_gcu_forward_impl.2} parent=5 // pred_check
      _
    $region46: #{_gcu_forward_impl.2} parent=5 // pred_check_branch
      %288 = sbr.rel (%p285) target = $region48
    $region47: #{_gcu_forward_impl.2} parent=5 // pred_region
      %s289 = ssub.s32 %s15, 1
      %s290 = sadd.s32 %s24, %s25
      %s291 = smul.u32 8, %s290
      %p292 = scmp.lt.s32.totalorder %s291, 15
      %s293 = scalar_select %p292, %s291, 15
      %s294 = smul.addr %s293, 4
      %s295 = scalar_lea.vmem %s0, %s294
      %p296 = pneg %p55
      %p297 = pneg %p52
      %p298 = pneg %p76
      %p299 = pneg %p73
      %p300 = pneg %p97
      %p301 = pneg %p94
      %p302 = pneg %p118
      %p303 = pneg %p115
      %p304 = pneg %p139
      %p305 = pneg %p136
      %p306 = pneg %p160
      %p307 = pneg %p157
      %p308 = pneg %p181
      %p309 = pneg %p178
      %p310 = pneg %p209
      %p311 = pneg %p206
      %p312 = scmp.lt.s32.totalorder %s24, 1
      %s313 = scalar_select %p312, %s24, 1
      %p314 = scmp.lt.s32.totalorder %s25, 0
      %s315 = scalar_select %p314, %s25, 0
      %s316 = sadd.s32 %s315, %s313
      %s317 = smul.addr %s316, 4
      %s318 = scalar_lea.vmem %s7, %s317
      %p319 = pneg %p235
      %p320 = pneg %p232
      %p321 = scmp.lt.s32.totalorder %s24, 1
      %s322 = scalar_select %p321, %s24, 1
      %s323 = smul.addr %s322, 4
      %s324 = scalar_lea.vmem %s8, %s323
      %s325 = sadd.s32 %s24, %s25
      %s326 = smul.u32 8, %s325
      %p327 = scmp.lt.s32.totalorder %s326, 15
      %s328 = scalar_select %p327, %s326, 15
      %s329 = smul.addr %s328, 4
      %s330 = scalar_lea.vmem %s0, %s329
      %s331 = sadd.s32 %s24, %s25
      %s332 = smul.u32 8, %s331
      %p333 = scmp.lt.s32.totalorder %s24, 1
      %s334 = scalar_select %p333, %s24, 1
      %p335 = scmp.lt.s32.totalorder %s25, 0
      %s336 = scalar_select %p335, %s25, 0
      %s337 = sadd.s32 %s336, %s334
      %s338 = smul.addr %s337, 4
      %s339 = scalar_lea.vmem %s7, %s338
      %p340 = scmp.lt.s32.totalorder %s24, 1
      %s341 = scalar_select %p340, %s24, 1
      %s342 = smul.addr %s341, 4
      %s343 = scalar_lea.vmem %s8, %s342
      %p345 = scmp.eq.s32.totalorder %s25, 0
      // Predicated region
      $region49: #{_gcu_forward_impl.2} parent=47 // pred_check
        %p346 = pneg %p345
      $region50: #{_gcu_forward_impl.2} parent=47 // pred_check_branch
        %348 = sbr.rel (%p346) target = $region52
      $region51: #{_gcu_forward_impl.2} parent=47 // pred_region
        %349 = vst [vmem:[#allocation2] sm:$0xff] 0.0
        %vm350 = vcmask 7168
        %351 = vst.msk [vmem:[#allocation3] sm:$0xff] %vm350, 0.0
      $region52: #{_gcu_forward_impl.2} parent=47 // pred_fallthru
        _
      %v352 = vld [vmem:[%s330] sm:$0xf]
      %v353 = vld [vmem:[%s330 + $0x4] sm:$0xf]
      %v354 = vld [vmem:[%s330 + $0x8] sm:$0xf]
      %v355 = vld [vmem:[%s330 + $0xc] sm:$0xf]
      %v356 = vld [vmem:[%s330 + $0x10] sm:$0xf]
      %v357 = vld [vmem:[%s330 + $0x14] sm:$0xf]
      %v358 = vld [vmem:[%s330 + $0x18] sm:$0xf]
      %v359 = vld [vmem:[%s330 + $0x1c] sm:$0xf]
      %v360 = vld [vmem:[%s1] sm:$0xf]
      %v361 = vmul.bf16 %v352, %v352
      %v362 = vmul.bf16 %v353, %v353
      %v363 = vmul.bf16 %v354, %v354
      %v364 = vmul.bf16 %v355, %v355
      %v365 = vmul.bf16 %v356, %v356
      %v366 = vmul.bf16 %v357, %v357
      %v367 = vmul.bf16 %v358, %v358
      %v368 = vmul.bf16 %v359, %v359
      %v369 = vld [vmem:[%s2] sm:$0xf]
      %v378 = vunpack.c.l.b16 %v352
      %v379 = vunpack.c.l.b16 %v353
      %v380 = vunpack.c.l.b16 %v354
      %v381 = vunpack.c.l.b16 %v355
      %v382 = vunpack.c.l.b16 %v356
      %v383 = vunpack.c.l.b16 %v357
      %v384 = vunpack.c.l.b16 %v358
      %v385 = vunpack.c.l.b16 %v359
      %v386 = vpack.c.b16 %v379, %v378
      %v387 = vpack.c.b16 %v381, %v380
      %v388 = vpack.c.b16 %v383, %v382
      %v389 = vpack.c.b16 %v385, %v384
      %394 = vmatprep.subr.bf16.mxu0 0
      %395 = vmatpush1.bf16.xpose.msra.mxu0 %v386
      %396 = vmatprep.subr.bf16.mxu0 0
      %397 = vmatpush1.bf16.xpose.msra.mxu0 %v387
      %398 = vmatprep.subr.bf16.mxu0 0
      %399 = vmatpush1.bf16.xpose.msra.mxu0 %v388
      %400 = vmatprep.subr.bf16.mxu0 0
      %401 = vmatpush1.bf16.xpose.msra.mxu0 %v389
      %402 = vmatprep.subr.bf16.mxu0 0
      %403 = vmatpush1.bf16.xpose.msra.mxu0 0
      %404 = vmatprep.subr.bf16.mxu0 0
      %405 = vmatpush1.bf16.xpose.msra.mxu0 0
      %406 = vmatprep.subr.bf16.mxu0 0
      %407 = vmatpush1.bf16.xpose.msra.mxu0 0
      %408 = vmatprep.subr.bf16.mxu0 0
      %409 = vmatpush1.bf16.xpose.msra.mxu0 0
      %410 = vmatprep.subr.bf16.mxu0 0
      %411 = vmatpush1.bf16.xpose.msra.mxu0 0
      %412 = vmatprep.subr.bf16.mxu0 0
      %413 = vmatpush1.bf16.xpose.msra.mxu0 0
      %414 = vmatprep.subr.bf16.mxu0 0
      %415 = vmatpush1.bf16.xpose.msra.mxu0 0
      %416 = vmatprep.subr.bf16.mxu0 0
      %417 = vmatpush1.bf16.xpose.msra.mxu0 0
      %418 = vmatprep.subr.bf16.mxu0 0
      %419 = vmatpush1.bf16.xpose.msra.mxu0 0
      %420 = vmatprep.subr.bf16.mxu0 0
      %421 = vmatpush1.bf16.xpose.msra.mxu0 0
      %422 = vmatprep.subr.bf16.mxu0 0
      %423 = vmatpush1.bf16.xpose.msra.mxu0 0
      %424 = vmatprep.subr.bf16.mxu0 0
      %425 = vmatpush1.bf16.xpose.msra.mxu0 0
      %426 = vmatprep.mubr.bf16.mxu0 0
      %427 = vmatmul.mubr.bf16.gmra.mrb[0].mxu0 %v369
      %v428 = vpop.f32.mrb[0].mxu0
      %v429 = vadd.f32 0.0, %v428
      %v430 = vpop.f32.mrb[0].mxu0
      %v431 = vpop.f32.mrb[0].mxu0
      %v432 = vpop.f32.mrb[0].mxu0
      %433 = vdwg.mxu0
      %v442 = vunpack.c.l.b16 %v361
      %v443 = vunpack.c.l.b16 %v362
      %v444 = vunpack.c.l.b16 %v363
      %v445 = vunpack.c.l.b16 %v364
      %v446 = vunpack.c.l.b16 %v365
      %v447 = vunpack.c.l.b16 %v366
      %v448 = vunpack.c.l.b16 %v367
      %v449 = vunpack.c.l.b16 %v368
      %v450 = vpack.c.b16 %v443, %v442
      %v451 = vpack.c.b16 %v445, %v444
      %v452 = vpack.c.b16 %v447, %v446
      %v453 = vpack.c.b16 %v449, %v448
      %458 = vmatprep.subr.bf16.mxu0 0
      %459 = vmatpush1.bf16.xpose.msra.mxu0 %v450
      %460 = vmatprep.subr.bf16.mxu0 0
      %461 = vmatpush1.bf16.xpose.msra.mxu0 %v451
      %462 = vmatprep.subr.bf16.mxu0 0
      %463 = vmatpush1.bf16.xpose.msra.mxu0 %v452
      %464 = vmatprep.subr.bf16.mxu0 0
      %465 = vmatpush1.bf16.xpose.msra.mxu0 %v453
      %466 = vmatprep.subr.bf16.mxu0 0
      %467 = vmatpush1.bf16.xpose.msra.mxu0 0
      %468 = vmatprep.subr.bf16.mxu0 0
      %469 = vmatpush1.bf16.xpose.msra.mxu0 0
      %470 = vmatprep.subr.bf16.mxu0 0
      %471 = vmatpush1.bf16.xpose.msra.mxu0 0
      %472 = vmatprep.subr.bf16.mxu0 0
      %473 = vmatpush1.bf16.xpose.msra.mxu0 0
      %474 = vmatprep.subr.bf16.mxu0 0
      %475 = vmatpush1.bf16.xpose.msra.mxu0 0
      %476 = vmatprep.subr.bf16.mxu0 0
      %477 = vmatpush1.bf16.xpose.msra.mxu0 0
      %478 = vmatprep.subr.bf16.mxu0 0
      %479 = vmatpush1.bf16.xpose.msra.mxu0 0
      %480 = vmatprep.subr.bf16.mxu0 0
      %481 = vmatpush1.bf16.xpose.msra.mxu0 0
      %482 = vmatprep.subr.bf16.mxu0 0
      %483 = vmatpush1.bf16.xpose.msra.mxu0 0
      %484 = vmatprep.subr.bf16.mxu0 0
      %485 = vmatpush1.bf16.xpose.msra.mxu0 0
      %486 = vmatprep.subr.bf16.mxu0 0
      %487 = vmatpush1.bf16.xpose.msra.mxu0 0
      %488 = vmatprep.subr.bf16.mxu0 0
      %489 = vmatpush1.bf16.xpose.msra.mxu0 0
      %490 = vmatprep.mubr.bf16.mxu0 0
      %491 = vmatmul.mubr.bf16.gmra.mrb[0].mxu0 %v360
      %v492 = vpop.f32.mrb[0].mxu0
      %v493 = vadd.f32 %v429, %v492
      %v494 = vpop.f32.mrb[0].mxu0
      %v495 = vpop.f32.mrb[0].mxu0
      %v496 = vpop.f32.mrb[0].mxu0
      %497 = vdwg.mxu0
      %v498 = vld [vmem:[%s3] sm:$0xff]
      %500 = vset.pattern.permute.xlu0 0
      %501 = vperm.xlu0 %500, %v498
      %v502 = vpop.permute.xlu0 %501
      %v504 = vadd.f32 %v493, %v502
      %vm505 = vcmask 523264
      %v506 = vsel %vm505, %v504, inf
      %v507 = vrot.slane %v506, 4
      %v508 = vmin.f32 %v506, %v507
      %v509 = vrot.slane %v508, 2
      %v510 = vmin.f32 %v508, %v509
      %v511 = vrot.slane %v510, 1
      %v512 = vmin.f32 %v510, %v511
      %v513 = vsub.f32 %v504, %v512
      %v514 = vmul.f32 %v513, -0.5
      %v515 = vmul.f32 %v514, 1.442695
      %v516 = vpow.pop %v515
      %v517 = vsel %vm505, %v516, 0.0
      %v518 = vrot.slane %v517, 4
      %v519 = vadd.f32 %v517, %v518
      %v520 = vrot.slane %v519, 2
      %v521 = vadd.f32 %v519, %v520
      %v522 = vrot.slane %v521, 1
      %v523 = vadd.f32 %v521, %v522
      %v524 = vrcp.pop %v523
      %v525 = vmul.f32 %v516, %v524
      %v526 = vpack.c.bf16 %v525, %v525
      %vm527 = vcmask 519168
      %528 = vst.msk [vmem:[%s339] sm:$0xf] %vm527, %v526
      %v529 = vld [vmem:[#allocation2] sm:$0xff]
      %v530 = vld [vmem:[%s330] sm:$0xf]
      %v531 = vld [vmem:[%s330 + $0x4] sm:$0xf]
      %v532 = vld [vmem:[%s330 + $0x8] sm:$0xf]
      %v533 = vld [vmem:[%s330 + $0xc] sm:$0xf]
      %v534 = vld [vmem:[%s330 + $0x10] sm:$0xf]
      %v535 = vld [vmem:[%s330 + $0x14] sm:$0xf]
      %v536 = vld [vmem:[%s330 + $0x18] sm:$0xf]
      %v537 = vld [vmem:[%s330 + $0x1c] sm:$0xf]
      %v546 = vunpack.c.l.b16 %v530
      %v547 = vunpack.c.l.b16 %v531
      %v548 = vunpack.c.l.b16 %v532
      %v549 = vunpack.c.l.b16 %v533
      %v550 = vunpack.c.l.b16 %v534
      %v551 = vunpack.c.l.b16 %v535
      %v552 = vunpack.c.l.b16 %v536
      %v553 = vunpack.c.l.b16 %v537
      %v554 = vpack.c.b16 %v547, %v546
      %v555 = vpack.c.b16 %v549, %v548
      %v556 = vpack.c.b16 %v551, %v550
      %v557 = vpack.c.b16 %v553, %v552
      %v563 = vsel %vm505, %v526, 0
      %565 = vmatprep.subr.bf16.mxu0 0
      %566 = vmatpush1.bf16.msra.mxu0 %v554
      %567 = vmatprep.subr.bf16.mxu0 0
      %568 = vmatpush1.bf16.msra.mxu0 %v555
      %569 = vmatprep.subr.bf16.mxu0 0
      %570 = vmatpush1.bf16.msra.mxu0 %v556
      %571 = vmatprep.subr.bf16.mxu0 0
      %572 = vmatpush1.bf16.msra.mxu0 %v557
      %573 = vmatprep.subr.bf16.mxu0 0
      %574 = vmatpush1.bf16.msra.mxu0 0
      %575 = vmatprep.subr.bf16.mxu0 0
      %576 = vmatpush1.bf16.msra.mxu0 0
      %577 = vmatprep.subr.bf16.mxu0 0
      %578 = vmatpush1.bf16.msra.mxu0 0
      %579 = vmatprep.subr.bf16.mxu0 0
      %580 = vmatpush1.bf16.msra.mxu0 0
      %581 = vmatprep.subr.bf16.mxu0 0
      %582 = vmatpush1.bf16.msra.mxu0 0
      %583 = vmatprep.subr.bf16.mxu0 0
      %584 = vmatpush1.bf16.msra.mxu0 0
      %585 = vmatprep.subr.bf16.mxu0 0
      %586 = vmatpush1.bf16.msra.mxu0 0
      %587 = vmatprep.subr.bf16.mxu0 0
      %588 = vmatpush1.bf16.msra.mxu0 0
      %589 = vmatprep.subr.bf16.mxu0 0
      %590 = vmatpush1.bf16.msra.mxu0 0
      %591 = vmatprep.subr.bf16.mxu0 0
      %592 = vmatpush1.bf16.msra.mxu0 0
      %593 = vmatprep.subr.bf16.mxu0 0
      %594 = vmatpush1.bf16.msra.mxu0 0
      %595 = vmatprep.subr.bf16.mxu0 0
      %596 = vmatpush1.bf16.msra.mxu0 0
      %597 = vmatprep.mubr.bf16.mxu0 0
      %598 = vmatmul.mubr.bf16.gmra.mrb[0].mxu0 %v563
      %v599 = vpop.f32.mrb[0].mxu0
      %v600 = vadd.f32 0.0, %v599
      %v601 = vpop.f32.mrb[0].mxu0
      %v602 = vpop.f32.mrb[0].mxu0
      %v603 = vpop.f32.mrb[0].mxu0
      %604 = vdwg.mxu0
      %v605 = vadd.f32 %v529, %v600
      %606 = vst [vmem:[#allocation2] sm:$0xff] %v605
      %v607 = vld [vmem:[#allocation3] sm:$0xff]
      %v608 = vsel %vm505, %v525, 0.0
      %609 = vadd.xlane.f32.xlu0 %v608
      %v610 = vpop.xlane.xlu0 %609
      %v611 = vadd.f32 %v607, %v610
      %vm612 = vcmask 7168
      %613 = vst.msk [vmem:[#allocation3] sm:$0xff] %vm612, %v611
      // Predicated region
      $region53: #{_gcu_forward_impl.2} parent=47 // pred_check
        %p614 = pneg %p345
      $region54: #{_gcu_forward_impl.2} parent=47 // pred_check_branch
        %616 = sbr.rel (%p614) target = $region56
      $region55: #{_gcu_forward_impl.2} parent=47 // pred_region
        %v617 = vld [vmem:[#allocation3] sm:$0xff]
        %v618 = vld [vmem:[#allocation2] sm:$0xff]
        %v619 = vld [vmem:[%s4] sm:$0xff]
        %621 = vset.pattern.permute.xlu0 0
        %622 = vperm.xlu0 %621, %v617
        %v623 = vpop.permute.xlu0 %622
        %v625 = vmul.f32 %v619, %v623
        %v626 = vsub.f32 %v618, %v625
        %v627 = vld [vmem:[%s5] sm:$0xff]
        %v628 = vmul.f32 %v626, %v627
        %v629 = vadd.f32 %v628, 1e-07
        %v630 = vadd.f32 %v617, 1e-07
        %632 = vset.pattern.permute.xlu0 0
        %633 = vperm.xlu0 %632, %v630
        %v634 = vpop.permute.xlu0 %633
        %v636 = vrcp.pop %v634
        %v637 = vmul.f32 %v629, %v636
        %v638 = vmul.f32 %v637, %v637
        %639 = vadd.xlane.f32.xlu0 %v638
        %v640 = vpop.xlane.xlu0 %639
        %v641 = vadd.f32 %v640, 1e-12
        %v642 = vrcp.pop %v641
        %v643 = vmul.f32 %v637, %v642
        %v644 = vpack.c.bf16 %v643, %v643
        %645 = vmatprep.subr.bf16.mxu0 0
        %646 = vmatpush1.bf16.xpose.msra.mxu0 %v644
        %647 = vmatprep.subr.bf16.mxu0 0
        %648 = vmatpush1.bf16.xpose.msra.mxu0 0
        %649 = vmatprep.subr.bf16.mxu0 0
        %650 = vmatpush1.bf16.xpose.msra.mxu0 0
        %651 = vmatprep.subr.bf16.mxu0 0
        %652 = vmatpush1.bf16.xpose.msra.mxu0 0
        %653 = vmatprep.subr.bf16.mxu0 0
        %654 = vmatpush1.bf16.xpose.msra.mxu0 0
        %655 = vmatprep.subr.bf16.mxu0 0
        %656 = vmatpush1.bf16.xpose.msra.mxu0 0
        %657 = vmatprep.subr.bf16.mxu0 0
        %658 = vmatpush1.bf16.xpose.msra.mxu0 0
        %659 = vmatprep.subr.bf16.mxu0 0
        %660 = vmatpush1.bf16.xpose.msra.mxu0 0
        %661 = vmatprep.subr.bf16.mxu0 0
        %662 = vmatpush1.bf16.xpose.msra.mxu0 0
        %663 = vmatprep.subr.bf16.mxu0 0
        %664 = vmatpush1.bf16.xpose.msra.mxu0 0
        %665 = vmatprep.subr.bf16.mxu0 0
        %666 = vmatpush1.bf16.xpose.msra.mxu0 0
        %667 = vmatprep.subr.bf16.mxu0 0
        %668 = vmatpush1.bf16.xpose.msra.mxu0 0
        %669 = vmatprep.subr.bf16.mxu0 0
        %670 = vmatpush1.bf16.xpose.msra.mxu0 0
        %671 = vmatprep.subr.bf16.mxu0 0
        %672 = vmatpush1.bf16.xpose.msra.mxu0 0
        %673 = vmatprep.subr.bf16.mxu0 0
        %674 = vmatpush1.bf16.xpose.msra.mxu0 0
        %675 = vmatprep.subr.bf16.mxu0 0
        %676 = vmatpush1.bf16.xpose.msra.mxu0 0
        %677 = vmatprep.mubr.bf16.mxu0 0
        %678 = vmatmul.mubr.bf16.gmra.mrb[0].mxu0 %v644
        %v679 = vpop.f32.mrb[0].mxu0
        %v680 = vadd.f32 0.0, %v679
        %v681 = vpop.f32.mrb[0].mxu0
        %v682 = vpop.f32.mrb[0].mxu0
        %v683 = vpop.f32.mrb[0].mxu0
        %684 = vdwg.mxu0
        %v685 = vld [vmem:[%s6] sm:$0xf]
        %v686 = vld [vmem:[%s6 + $0x4] sm:$0xf]
        %v687 = vld [vmem:[%s6 + $0x8] sm:$0xf]
        %v688 = vld [vmem:[%s6 + $0xc] sm:$0xf]
        %v689 = vld [vmem:[%s6 + $0x10] sm:$0xf]
        %v690 = vld [vmem:[%s6 + $0x14] sm:$0xf]
        %v691 = vld [vmem:[%s6 + $0x18] sm:$0xf]
        %v692 = vld [vmem:[%s6 + $0x1c] sm:$0xf]
        %v693 = vld [vmem:[%s6 + $0x20] sm:$0xf]
        %v694 = vld [vmem:[%s6 + $0x24] sm:$0xf]
        %v695 = vld [vmem:[%s6 + $0x28] sm:$0xf]
        %v696 = vld [vmem:[%s6 + $0x2c] sm:$0xf]
        %v697 = vld [vmem:[%s6 + $0x30] sm:$0xf]
        %v698 = vld [vmem:[%s6 + $0x34] sm:$0xf]
        %v699 = vld [vmem:[%s6 + $0x38] sm:$0xf]
        %v700 = vld [vmem:[%s6 + $0x3c] sm:$0xf]
        %v717 = vunpack.c.l.b16 %v685
        %v718 = vunpack.c.l.b16 %v686
        %v719 = vunpack.c.l.b16 %v687
        %v720 = vunpack.c.l.b16 %v688
        %v721 = vunpack.c.l.b16 %v689
        %v722 = vunpack.c.l.b16 %v690
        %v723 = vunpack.c.l.b16 %v691
        %v724 = vunpack.c.l.b16 %v692
        %v725 = vunpack.c.l.b16 %v693
        %v726 = vunpack.c.l.b16 %v694
        %v727 = vunpack.c.l.b16 %v695
        %v728 = vunpack.c.l.b16 %v696
        %v729 = vunpack.c.l.b16 %v697
        %v730 = vunpack.c.l.b16 %v698
        %v731 = vunpack.c.l.b16 %v699
        %v732 = vunpack.c.l.b16 %v700
        %v733 = vpack.c.b16 %v718, %v717
        %v734 = vpack.c.b16 %v720, %v719
        %v735 = vpack.c.b16 %v722, %v721
        %v736 = vpack.c.b16 %v724, %v723
        %v737 = vpack.c.b16 %v726, %v725
        %v738 = vpack.c.b16 %v728, %v727
        %v739 = vpack.c.b16 %v730, %v729
        %v740 = vpack.c.b16 %v732, %v731
        %749 = vmatprep.subr.bf16.mxu0 0
        %750 = vmatpush1.bf16.msra.mxu0 %v733
        %751 = vmatprep.subr.bf16.mxu0 0
        %752 = vmatpush1.bf16.msra.mxu0 %v734
        %753 = vmatprep.subr.bf16.mxu0 0
        %754 = vmatpush1.bf16.msra.mxu0 %v735
        %755 = vmatprep.subr.bf16.mxu0 0
        %756 = vmatpush1.bf16.msra.mxu0 %v736
        %757 = vmatprep.subr.bf16.mxu0 0
        %758 = vmatpush1.bf16.msra.mxu0 %v737
        %759 = vmatprep.subr.bf16.mxu0 0
        %760 = vmatpush1.bf16.msra.mxu0 %v738
        %761 = vmatprep.subr.bf16.mxu0 0
        %762 = vmatpush1.bf16.msra.mxu0 %v739
        %763 = vmatprep.subr.bf16.mxu0 0
        %764 = vmatpush1.bf16.msra.mxu0 %v740
        %765 = vmatprep.subr.bf16.mxu0 0
        %766 = vmatpush1.bf16.msra.mxu0 0
        %767 = vmatprep.subr.bf16.mxu0 0
        %768 = vmatpush1.bf16.msra.mxu0 0
        %769 = vmatprep.subr.bf16.mxu0 0
        %770 = vmatpush1.bf16.msra.mxu0 0
        %771 = vmatprep.subr.bf16.mxu0 0
        %772 = vmatpush1.bf16.msra.mxu0 0
        %773 = vmatprep.subr.bf16.mxu0 0
        %774 = vmatpush1.bf16.msra.mxu0 0
        %775 = vmatprep.subr.bf16.mxu0 0
        %776 = vmatpush1.bf16.msra.mxu0 0
        %777 = vmatprep.subr.bf16.mxu0 0
        %778 = vmatpush1.bf16.msra.mxu0 0
        %779 = vmatprep.subr.bf16.mxu0 0
        %780 = vmatpush1.bf16.msra.mxu0 0
        %781 = vmatprep.mubr.bf16.mxu0 0
        %782 = vmatmul.mubr.bf16.gmra.mrb[0].mxu0 %v644
        %v783 = vpop.f32.mrb[0].mxu0
        %v784 = vadd.f32 0.0, %v783
        %v785 = vpop.f32.mrb[0].mxu0
        %v786 = vpop.f32.mrb[0].mxu0
        %v787 = vpop.f32.mrb[0].mxu0
        %788 = vdwg.mxu0
        %v789 = vpack.c.bf16 %v680, %v680
        %v790 = vpack.c.bf16 %v784, %v784
        %vm791 = vcmask 64512
        %v793 = vsel %vm791, %v789, 0
        %vm795 = vcmask 1043456
        %v797 = vsel %vm795, %v790, 0
        %799 = vmatprep.subr.bf16.mxu0 0
        %800 = vmatpush1.bf16.msra.mxu0 %v797
        %801 = vmatprep.subr.bf16.mxu0 0
        %802 = vmatpush1.bf16.msra.mxu0 0
        %803 = vmatprep.subr.bf16.mxu0 0
        %804 = vmatpush1.bf16.msra.mxu0 0
        %805 = vmatprep.subr.bf16.mxu0 0
        %806 = vmatpush1.bf16.msra.mxu0 0
        %807 = vmatprep.subr.bf16.mxu0 0
        %808 = vmatpush1.bf16.msra.mxu0 0
        %809 = vmatprep.subr.bf16.mxu0 0
        %810 = vmatpush1.bf16.msra.mxu0 0
        %811 = vmatprep.subr.bf16.mxu0 0
        %812 = vmatpush1.bf16.msra.mxu0 0
        %813 = vmatprep.subr.bf16.mxu0 0
        %814 = vmatpush1.bf16.msra.mxu0 0
        %815 = vmatprep.subr.bf16.mxu0 0
        %816 = vmatpush1.bf16.msra.mxu0 0
        %817 = vmatprep.subr.bf16.mxu0 0
        %818 = vmatpush1.bf16.msra.mxu0 0
        %819 = vmatprep.subr.bf16.mxu0 0
        %820 = vmatpush1.bf16.msra.mxu0 0
        %821 = vmatprep.subr.bf16.mxu0 0
        %822 = vmatpush1.bf16.msra.mxu0 0
        %823 = vmatprep.subr.bf16.mxu0 0
        %824 = vmatpush1.bf16.msra.mxu0 0
        %825 = vmatprep.subr.bf16.mxu0 0
        %826 = vmatpush1.bf16.msra.mxu0 0
        %827 = vmatprep.subr.bf16.mxu0 0
        %828 = vmatpush1.bf16.msra.mxu0 0
        %829 = vmatprep.subr.bf16.mxu0 0
        %830 = vmatpush1.bf16.msra.mxu0 0
        %831 = vmatprep.mubr.bf16.mxu0 0
        %832 = vmatmul.mubr.bf16.gmra.mrb[0].mxu0 %v793
        %v833 = vpop.f32.mrb[0].mxu0
        %v834 = vadd.f32 0.0, %v833
        %v835 = vpop.f32.mrb[0].mxu0
        %v836 = vpop.f32.mrb[0].mxu0
        %v837 = vpop.f32.mrb[0].mxu0
        %838 = vdwg.mxu0
        %v839 = vmax.f32 %v834, 0.0
        %v840 = vpack.c.bf16 %v839, %v839
        %841 = vst [vmem:[%s343] sm:$0xf] %v840
      $region56: #{_gcu_forward_impl.2} parent=47 // pred_fallthru
        _
      %p842 = scmp.lt.s32.totalorder %s24, 1
      %s843 = scalar_select %p842, %s24, 1
      %p844 = scmp.lt.s32.totalorder %s25, 0
      %s845 = scalar_select %p844, %s25, 0
      %s846 = sadd.s32 %s845, %s843
      %s847 = smul.addr %s846, 4
      %s848 = scalar_lea.vmem %s7, %s847
      %p849 = scmp.lt.s32.totalorder %s24, 1
      %s850 = scalar_select %p849, %s24, 1
      %s851 = smul.addr %s850, 4
      %s852 = scalar_lea.vmem %s8, %s851
      // Predicated region
      $region57: #{_gcu_forward_impl.2} parent=47 // pred_check
        %p853 = pneg %p206
      $region58: #{_gcu_forward_impl.2} parent=47 // pred_check_branch
        %855 = sbr.rel (%p853) target = $region60
      $region59: #{_gcu_forward_impl.2} parent=47 // pred_region
        _
      $region60: #{_gcu_forward_impl.2} parent=47 // pred_fallthru
        _
      // Predicated region
      $region61: #{_gcu_forward_impl.2} parent=47 // pred_check
        %p856 = pneg %p232
      $region62: #{_gcu_forward_impl.2} parent=47 // pred_check_branch
        %858 = sbr.rel (%p856) target = $region64
      $region63: #{_gcu_forward_impl.2} parent=47 // pred_region
        _
      $region64: #{_gcu_forward_impl.2} parent=47 // pred_fallthru
        _
    $region48: #{_gcu_forward_impl.2} parent=5 // pred_fallthru
      _
    %p859 = scmp.le.s32.totalorder 2, %s15
    // Predicated region
    $region65: #{_gcu_forward_impl.2} parent=5 // pred_check
      %p860 = pneg %p859
    $region66: #{_gcu_forward_impl.2} parent=5 // pred_check_branch
      %862 = sbr.rel (%p860) target = $region68
    $region67: #{_gcu_forward_impl.2} parent=5 // pred_region
      %s863 = ssub.s32 %s15, 2
      // Predicated region
      $region69: #{_gcu_forward_impl.2} parent=67 // pred_check
        %p864 = pneg %p212
      $region70: #{_gcu_forward_impl.2} parent=67 // pred_check_branch
        %866 = sbr.rel (%p864) target = $region72
      $region71: #{_gcu_forward_impl.2} parent=67 // pred_region
        %p867 = scmp.lt.s32.totalorder %s26, 1
        %s868 = scalar_select %p867, %s26, 1
        %p869 = scmp.lt.s32.totalorder %s27, 0
        %s870 = scalar_select %p869, %s27, 0
        %s871 = sadd.s32 %s870, %s868
        %s872 = smul.addr %s871, 4
        %s873 = scalar_lea.vmem %s7, %s872
      $region72: #{_gcu_forward_impl.2} parent=67 // pred_fallthru
        _
      // Predicated region
      $region73: #{_gcu_forward_impl.2} parent=67 // pred_check
        %p874 = pneg %p238
      $region74: #{_gcu_forward_impl.2} parent=67 // pred_check_branch
        %876 = sbr.rel (%p874) target = $region76
      $region75: #{_gcu_forward_impl.2} parent=67 // pred_region
        %p877 = scmp.lt.s32.totalorder %s26, 1
        %s878 = scalar_select %p877, %s26, 1
        %s879 = smul.addr %s878, 4
        %s880 = scalar_lea.vmem %s8, %s879
      $region76: #{_gcu_forward_impl.2} parent=67 // pred_fallthru
        _
    $region68: #{_gcu_forward_impl.2} parent=5 // pred_fallthru
      _
  $region6: #{_gcu_forward_impl.2} parent=0 // loop_footer
    %s19 = sadd.s32 1, %s15
  $region7: #{_gcu_forward_impl.2} parent=0 // loop_footer_branch
    %14 = sbr.rel target = $region3
  $region8: #{_gcu_forward_impl.2} parent=0 // loop_exit
    _

</llo_original>
